<compile_context>
chip_gen: v7x
topology: tpu7x:2x2x1
jax: 0.10.0
libtpu: 0.0.40
codegen_flags: <defaults>
</compile_context>

<pallas_src>
import jax
import jax.numpy as jnp
from jax.experimental import pallas as pl
from jax.experimental.pallas import tpu as pltpu


def _agi_hyperdim_kernel(x_ref, w0_ref, wf_ref, out_ref):
    """One batch-tile of the fractal/hyperdimensional pipeline.

    x_ref  : (TB, D_IN) f32   input tile
    w0_ref : (D_IN, H)  bf16  input -> hyperdimensional projection (grid-invariant)
    wf_ref : (L, H, H)  bf16  fractal layer weights (grid-invariant)
    out_ref: (TB, H)    f32   "insights" output tile
    """
    # Fractal geometry: hyperdimensional projection. bf16 MXU operands, f32 acc.
    h = jnp.dot(x_ref[...].astype(jnp.bfloat16), w0_ref[...],
                preferred_element_type=jnp.float32)

    # Self-similar (fractal) residual layers.  num_layers is static and small,
    # so unroll: wf_ref[l] becomes a constant-offset VMEM load and the EUP tanh
    # of layer l overlaps the MXU work of layer l+1.
    num_layers = wf_ref.shape[0]
    for l in range(num_layers):
        t = jnp.dot(h.astype(jnp.bfloat16), wf_ref[l],
                    preferred_element_type=jnp.float32)
        h = jnp.tanh(t) + h  # residual stays in f32

    # Topological data analysis: per-sample mean-centering.
    # Explicit multiply by 1/H (no divide); the lane reduction lands on the XLU.
    inv_h = jnp.float32(1.0 / out_ref.shape[-1])
    h = h - jnp.sum(h, axis=-1, keepdims=True) * inv_h
    out_ref[...] = h.astype(out_ref.dtype)


def _make_specs(tile_b, d_in, H, L, *, buffer_hints):
    """BlockSpecs; optionally with explicit pipeline buffer-count hints."""
    def bs(shape, index_map, bufs):
        if buffer_hints and bufs is not None:
            return pl.BlockSpec(shape, index_map,
                                pipeline_mode=pl.Buffered(buffer_count=bufs))
        return pl.BlockSpec(shape, index_map)

    in_specs = [
        # x tile: deeper pipeline hides the next tile's HBM->VMEM DMA.
        bs((tile_b, d_in), lambda i: (i, 0), 3),
        # Grid-invariant weights: single-buffer (their block index never
        # changes, so double-buffering only wastes VMEM — matters on v7x's
        # 64 MiB VMEM budget).
        bs((d_in, H), lambda i: (0, 0), 1),
        bs((L, H, H), lambda i: (0, 0, 0), 1),
    ]
    out_spec = pl.BlockSpec((tile_b, H), lambda i: (i, 0))
    return in_specs, out_spec


def agi_hyperdimensional_forward(x, w0, wf, *, tile_b=128):
    """x: (B, D_IN); w0: (D_IN, H); wf: (L, H, H) -> insights (B, H) f32."""
    B, d_in = x.shape
    H = w0.shape[1]
    L = wf.shape[0]

    # Zero-pad ragged batches up to the tile size; slice off afterwards.
    B_pad = int(tile_b * pl.cdiv(B, tile_b))
    if B_pad != B:
        x = jnp.pad(x, ((0, B_pad - B), (0, 0)))
    x = x.astype(jnp.float32)

    # bf16 MXU operands: 2-3x MXU throughput, half the weight DMA/VMEM footprint.
    w0_b = w0.astype(jnp.bfloat16)
    wf_b = wf.astype(jnp.bfloat16)

    grid = (B_pad // tile_b,)

    cost = pl.CostEstimate(
        flops=2 * B_pad * (d_in * H + L * H * H),
        transcendentals=B_pad * H * L,
        bytes_accessed=(x.size * 4 + w0_b.size * 2 + wf_b.size * 2 + B_pad * H * 4),
    )

    def run(buffer_hints):
        in_specs, out_spec = _make_specs(tile_b, d_in, H, L,
                                         buffer_hints=buffer_hints)
        return pl.pallas_call(
            _agi_hyperdim_kernel,
            out_shape=jax.ShapeDtypeStruct((B_pad, H), jnp.float32),
            grid_spec=pltpu.PrefetchScalarGridSpec(
                num_scalar_prefetch=0,
                grid=grid,
                in_specs=in_specs,
                out_specs=out_spec,
            ),
            compiler_params=pltpu.CompilerParams(
                # Batch axis is embarrassingly parallel -> shards across the
                # two TensorCores on v7x (no-op on v5e/v6e).
                dimension_semantics=("parallel",),
            ),
            cost_estimate=cost,
        )(x, w0_b, wf_b)

    try:
        out = run(buffer_hints=True)
    except Exception:
        # pl.Buffered pipeline hints not supported by this jax/Mosaic build;
        # fall back to default double-buffering (identical semantics).
        out = run(buffer_hints=False)
    return out[:B]


def make_params(key, d_in, num_hyperdimensions, num_fractal_layers):
    """Deterministic synthetic parameter init (no checkpoint load)."""
    k0, k1 = jax.random.split(key)
    w0 = (jax.random.normal(k0, (d_in, num_hyperdimensions), jnp.float32)
          / jnp.sqrt(jnp.float32(d_in)))
    wf = (jax.random.normal(
              k1, (num_fractal_layers, num_hyperdimensions, num_hyperdimensions),
              jnp.float32)
          / jnp.sqrt(jnp.float32(num_hyperdimensions)))
    return w0, wf


if __name__ == "__main__":
    # Demo shapes consistent with the module: a batch of flat feature vectors
    # projected into num_hyperdimensions through num_fractal_layers.
    # batch=256 -> 2 grid steps at tile_b=128 (keeps both v7x TCs busy);
    # H=256 is a multiple of 256 (fills v6e/v7x MXU columns).
    batch = 256
    d_in = 32
    num_hyperdimensions = 256
    num_fractal_layers = 3

    key = jax.random.PRNGKey(0)
    kx, kp = jax.random.split(key)
    x = jax.random.normal(kx, (batch, d_in), jnp.float32)
    w0, wf = make_params(kp, d_in, num_hyperdimensions, num_fractal_layers)

    insights = agi_hyperdimensional_forward(x, w0, wf)
    jax.block_until_ready(insights)

    # Pure-JAX reference mirroring the in-kernel bf16-operand / f32-accumulate math.
    xb = x.astype(jnp.bfloat16)
    w0b = w0.astype(jnp.bfloat16)
    wfb = wf.astype(jnp.bfloat16)
    h_ref = jnp.dot(xb, w0b, preferred_element_type=jnp.float32)
    for l in range(num_fractal_layers):
        h_ref = jnp.tanh(jnp.dot(h_ref.astype(jnp.bfloat16), wfb[l],
                                 preferred_element_type=jnp.float32)) + h_ref
    ref = h_ref - jnp.sum(h_ref, axis=-1, keepdims=True) * (1.0 / num_hyperdimensions)

    assert insights.shape == (batch, num_hyperdimensions)
    err = float(jnp.max(jnp.abs(insights - ref)))
    assert jnp.allclose(insights, ref, atol=2e-2, rtol=2e-2), err

    print("KERNEL_OK")
</pallas_src>

<mosaic_0001>
module attributes {stable_mosaic.version = 11 : i64} {
  func.func @_agi_hyperdim_kernel(%arg0: i32, %arg1: memref<128x32xf32, #tpu.memory_space<vmem>>, %arg2: memref<32x256xbf16, #tpu.memory_space<vmem>>, %arg3: memref<3x256x256xbf16, #tpu.memory_space<vmem>>, %arg4: memref<128x256xf32, #tpu.memory_space<vmem>>) attributes {dimension_semantics = [#tpu.dimension_semantics<parallel>], iteration_bounds = array<i64: 2>, scalar_prefetch = 0 : i64, scratch_operands = 0 : i64, tpu.core_type = #tpu.core_type<tc>, window_params = [{transform_indices = @transform_0, window_bounds = array<i64: 128, 32>}, {pipeline_mode = #tpu.pipeline_mode<synchronous>, transform_indices = @transform_1, window_bounds = array<i64: 32, 256>}, {pipeline_mode = #tpu.pipeline_mode<synchronous>, transform_indices = @transform_2, window_bounds = array<i64: 3, 256, 256>}, {transform_indices = @transform_3, window_bounds = array<i64: 128, 256>}]} {
    %c0 = arith.constant 0 : index
    %c0_0 = arith.constant 0 : index
    %0 = vector.load %arg1[%c0, %c0_0] : memref<128x32xf32, #tpu.memory_space<vmem>>, vector<128x32xf32>
    %1 = arith.truncf %0 : vector<128x32xf32> to vector<128x32xbf16>
    %c0_1 = arith.constant 0 : index
    %c0_2 = arith.constant 0 : index
    %2 = vector.load %arg2[%c0_1, %c0_2] : memref<32x256xbf16, #tpu.memory_space<vmem>>, vector<32x256xbf16>
    %cst = arith.constant dense<0.000000e+00> : vector<128x256xf32>
    %3 = tpu.matmul %1, %2, %cst {dimension_numbers = #tpu.dot_dimension_numbers<[1], [0], [0], [1], [0, 0, 1, 1], [], []>} : vector<128x32xbf16>, vector<32x256xbf16>, vector<128x256xf32> -> vector<128x256xf32>
    %4 = arith.truncf %3 : vector<128x256xf32> to vector<128x256xbf16>
    %c0_3 = arith.constant 0 : index
    %c0_4 = arith.constant 0 : index
    %c0_5 = arith.constant 0 : index
    %5 = vector.load %arg3[%c0_3, %c0_4, %c0_5] : memref<3x256x256xbf16, #tpu.memory_space<vmem>>, vector<1x256x256xbf16>
    %6 = vector.shape_cast %5 : vector<1x256x256xbf16> to vector<256x256xbf16>
    %cst_6 = arith.constant dense<0.000000e+00> : vector<128x256xf32>
    %7 = tpu.matmul %4, %6, %cst_6 {dimension_numbers = #tpu.dot_dimension_numbers<[1], [0], [0], [1], [0, 0, 1, 1], [], []>} : vector<128x256xbf16>, vector<256x256xbf16>, vector<128x256xf32> -> vector<128x256xf32>
    %8 = math.tanh %7 : vector<128x256xf32>
    %9 = arith.addf %8, %3 : vector<128x256xf32>
    %10 = arith.truncf %9 : vector<128x256xf32> to vector<128x256xbf16>
    %c1 = arith.constant 1 : index
    %c0_7 = arith.constant 0 : index
    %c0_8 = arith.constant 0 : index
    %11 = vector.load %arg3[%c1, %c0_7, %c0_8] : memref<3x256x256xbf16, #tpu.memory_space<vmem>>, vector<1x256x256xbf16>
    %12 = vector.shape_cast %11 : vector<1x256x256xbf16> to vector<256x256xbf16>
    %cst_9 = arith.constant dense<0.000000e+00> : vector<128x256xf32>
    %13 = tpu.matmul %10, %12, %cst_9 {dimension_numbers = #tpu.dot_dimension_numbers<[1], [0], [0], [1], [0, 0, 1, 1], [], []>} : vector<128x256xbf16>, vector<256x256xbf16>, vector<128x256xf32> -> vector<128x256xf32>
    %14 = math.tanh %13 : vector<128x256xf32>
    %15 = arith.addf %14, %9 : vector<128x256xf32>
    %16 = arith.truncf %15 : vector<128x256xf32> to vector<128x256xbf16>
    %c2 = arith.constant 2 : index
    %c0_10 = arith.constant 0 : index
    %c0_11 = arith.constant 0 : index
    %17 = vector.load %arg3[%c2, %c0_10, %c0_11] : memref<3x256x256xbf16, #tpu.memory_space<vmem>>, vector<1x256x256xbf16>
    %18 = vector.shape_cast %17 : vector<1x256x256xbf16> to vector<256x256xbf16>
    %cst_12 = arith.constant dense<0.000000e+00> : vector<128x256xf32>
    %19 = tpu.matmul %16, %18, %cst_12 {dimension_numbers = #tpu.dot_dimension_numbers<[1], [0], [0], [1], [0, 0, 1, 1], [], []>} : vector<128x256xbf16>, vector<256x256xbf16>, vector<128x256xf32> -> vector<128x256xf32>
    %20 = math.tanh %19 : vector<128x256xf32>
    %21 = arith.addf %20, %15 : vector<128x256xf32>
    %cst_13 = arith.constant dense<0.000000e+00> : vector<128xf32>
    %22 = vector.multi_reduction <add>, %21, %cst_13 [1] : vector<128x256xf32> to vector<128xf32>
    %23 = vector.shape_cast %22 : vector<128xf32> to vector<128x1xf32>
    %cst_14 = arith.constant 3.906250e-03 : f32
    %24 = vector.broadcast %cst_14 : f32 to vector<128x1xf32>
    %25 = arith.mulf %23, %24 : vector<128x1xf32>
    %26 = vector.broadcast %25 : vector<128x1xf32> to vector<128x256xf32>
    %27 = arith.subf %21, %26 : vector<128x256xf32>
    %c0_15 = arith.constant 0 : index
    %c0_16 = arith.constant 0 : index
    %28 = vector.load %arg4[%c0_15, %c0_16] : memref<128x256xf32, #tpu.memory_space<vmem>>, vector<128x256xf32>
    tpu.vector_store %arg4[%c0_15, %c0_16], %27 {strides = array<i32>} : memref<128x256xf32, #tpu.memory_space<vmem>>, vector<128x256xf32>,
    return
  }
  func.func @transform_0(%arg0: i32) -> (i32, i32) {
    %c0_i32 = arith.constant 0 : i32
    %c0_i32_0 = arith.constant 0 : i32
    return %arg0, %c0_i32 : i32, i32
  }
  func.func @transform_1(%arg0: i32) -> (i32, i32) {
    %c0_i32 = arith.constant 0 : i32
    %c0_i32_0 = arith.constant 0 : i32
    %c0_i32_1 = arith.constant 0 : i32
    return %c0_i32, %c0_i32_0 : i32, i32
  }
  func.func @transform_2(%arg0: i32) -> (i32, i32, i32) {
    %c0_i32 = arith.constant 0 : i32
    %c0_i32_0 = arith.constant 0 : i32
    %c0_i32_1 = arith.constant 0 : i32
    %c0_i32_2 = arith.constant 0 : i32
    return %c0_i32, %c0_i32_0, %c0_i32_1 : i32, i32, i32
  }
  func.func @transform_3(%arg0: i32) -> (i32, i32) {
    %c0_i32 = arith.constant 0 : i32
    %c0_i32_0 = arith.constant 0 : i32
    return %arg0, %c0_i32 : i32, i32
  }
}

</mosaic_0001>

<llo_original>
// kernel: tpu_custom_call.1
$region0: #{tpu_custom_call.1}
  #allocation0 [shape = 'u32[]', space=smem, size = 0x4, offset = 0x4, fixed_abs, tag = 'smem constant byte address 0x4 - core index']
  #allocation1 [shape = 'u32[144,128]{1,0:T(1,128)}', space=vmem, size = 0x12000, scoped, tag = 'internal scratch']
  %s0 = inlined_call_operand.vmem [shape: f32[256,32], index: 0, kind: input, shape index: {}]
  %s1 = inlined_call_operand.vmem [shape: bf16[32,256], index: 1, kind: input, shape index: {}]
  %s2 = inlined_call_operand.hbm [shape: bf16[3,256,256], index: 2, kind: input, shape index: {}]
  %s3 = inlined_call_operand.hbm [shape: f32[256,256], index: 3, kind: output, shape index: {}]
  %s4 = sld [smem:[#allocation0]]
  $region49: #{tpu_custom_call.1} parent=0
    _
  %s6 = ssub.s32 1, %s4
  %s7 = scalar_select 0, %s6, %s4
  $region1: #{tpu_custom_call.1} parent=0
    #allocation2 [shape = 'u8[393216]{0}', space=vmem, size = 0x60000, scoped, tag = 'input window, operand 2, single buffered']
    #allocation3 [shape = 's32[2]{0}', space=sflag, size = 0x8, scoped, tag = 'scoped memory for tpu_custom_call.1']
    #allocation4 [shape = 's32[2]{0}', space=sflag, size = 0x8, scoped, tag = 'scoped memory for tpu_custom_call.1']
    #allocation5 [shape = 'u8[262144]{0}', space=vmem, size = 0x40000, scoped, tag = 'output window, operand 0']
    %8 = vsyncpa [#allocation3], 0
    %9 = vsyncpa [#allocation4], 0
    %s10 = scalar_lea.sflag [#allocation4], 1
    %11 = vsyncpa %s10, 0
    loop: start=0, step=1, limit=4
    $region2: #{tpu_custom_call.1} parent=1 // loop_pre_header
      _
    $region3: #{tpu_custom_call.1} parent=1 // loop_header
      %s13 = sphi 0, %s17
      %p14 = scmp.ge.s32.totalorder %s13, 4
      %s23 = sphi 0, %s25
      %s26 = sphi 0, %s23
      %s27 = sphi 0, %s26
      %s43 = sphi 0, %s27
      %s47 = sphi 0, %s47
      %s49 = sphi 0, %s47
      %s50 = sphi 0, %s49
      %s64 = sphi 0, %s50
      %s68 = sphi 0, %s68
      %s70 = sphi 0, %s68
      %s71 = sphi 0, %s70
      %s85 = sphi 0, %s71
      %s91 = sphi 0, %s93
      %s94 = sphi 0, %s91
      %s95 = sphi 0, %s94
      %s111 = sphi 0, %s95
    $region4: #{tpu_custom_call.1} parent=1 // loop_header_branch
      %16 = sbr.rel (%p14) target = $region8
    $region5: #{tpu_custom_call.1} parent=1 // loop_body
      %s18 = ssub.s32 %s13, 1
      %s19 = ssub.s32 %s13, 2
      %s20 = sadd.s32 %s13, 1
      %s21 = ssub.s32 %s13, %s20
      %p22 = scmp.eq.s32.totalorder %s21, 0
      %s24 = sadd.s32 %s23, 1
      %s25 = scalar_select %p22, %s23, %s24
      %p28 = pneg %p22
      %p29 = scmp.eq.s32.totalorder %s13, 1
      %p30 = por %p28, %p29
      %p31 = scmp.ne.s32.totalorder %s23, %s26
      %p32 = scmp.eq.s32.totalorder %s13, 0
      %p33 = por %p31, %p32
      %p34 = scmp.ne.s32.totalorder %s23, %s26
      %p35 = scmp.eq.s32.totalorder %s18, 1
      %p36 = por %p34, %p35
      %p37 = scmp.ne.s32.totalorder %s26, %s27
      %p38 = scmp.eq.s32.totalorder %s18, 0
      %p39 = por %p37, %p38
      %p40 = scmp.ne.s32.totalorder %s26, %s27
      %p41 = scmp.eq.s32.totalorder %s19, 1
      %p42 = por %p40, %p41
      %p44 = scmp.ne.s32.totalorder %s27, %s43
      %p45 = scmp.eq.s32.totalorder %s19, 0
      %p46 = por %p44, %p45
      %s48 = sadd.s32 %s47, 1
      %p51 = scmp.eq.s32.totalorder %s13, 1
      %p52 = scmp.ne.s32.totalorder %s47, %s49
      %p53 = scmp.eq.s32.totalorder %s13, 0
      %p54 = por %p52, %p53
      %p55 = scmp.ne.s32.totalorder %s47, %s49
      %p56 = scmp.eq.s32.totalorder %s18, 1
      %p57 = por %p55, %p56
      %p58 = scmp.ne.s32.totalorder %s49, %s50
      %p59 = scmp.eq.s32.totalorder %s18, 0
      %p60 = por %p58, %p59
      %p61 = scmp.ne.s32.totalorder %s49, %s50
      %p62 = scmp.eq.s32.totalorder %s19, 1
      %p63 = por %p61, %p62
      %p65 = scmp.ne.s32.totalorder %s50, %s64
      %p66 = scmp.eq.s32.totalorder %s19, 0
      %p67 = por %p65, %p66
      %s69 = sadd.s32 %s68, 1
      %p72 = scmp.eq.s32.totalorder %s13, 1
      %p73 = scmp.ne.s32.totalorder %s68, %s70
      %p74 = scmp.eq.s32.totalorder %s13, 0
      %p75 = por %p73, %p74
      %p76 = scmp.ne.s32.totalorder %s68, %s70
      %p77 = scmp.eq.s32.totalorder %s18, 1
      %p78 = por %p76, %p77
      %p79 = scmp.ne.s32.totalorder %s70, %s71
      %p80 = scmp.eq.s32.totalorder %s18, 0
      %p81 = por %p79, %p80
      %p82 = scmp.ne.s32.totalorder %s70, %s71
      %p83 = scmp.eq.s32.totalorder %s19, 1
      %p84 = por %p82, %p83
      %p86 = scmp.ne.s32.totalorder %s71, %s85
      %p87 = scmp.eq.s32.totalorder %s19, 0
      %p88 = por %p86, %p87
      %s89 = ssub.s32 %s13, %s20
      %p90 = scmp.eq.s32.totalorder %s89, 0
      %s92 = sadd.s32 %s91, 1
      %s93 = scalar_select %p90, %s91, %s92
      %p96 = pneg %p90
      %p97 = scmp.eq.s32.totalorder %s13, 1
      %p98 = por %p96, %p97
      %p99 = scmp.ne.s32.totalorder %s91, %s94
      %p100 = scmp.eq.s32.totalorder %s13, 0
      %p101 = por %p99, %p100
      %p102 = scmp.ne.s32.totalorder %s91, %s94
      %p103 = scmp.eq.s32.totalorder %s18, 1
      %p104 = por %p102, %p103
      %p105 = scmp.ne.s32.totalorder %s94, %s95
      %p106 = scmp.eq.s32.totalorder %s18, 0
      %p107 = por %p105, %p106
      %p108 = scmp.ne.s32.totalorder %s94, %s95
      %p109 = scmp.eq.s32.totalorder %s19, 1
      %p110 = por %p108, %p109
      %p112 = scmp.ne.s32.totalorder %s95, %s111
      %p113 = scmp.eq.s32.totalorder %s19, 0
      %p114 = por %p112, %p113
      %p115 = scmp.le.s32.totalorder 1, %s13
      %p116 = scmp.lt.s32.totalorder %s13, 3
      %p117 = pnand %p115, %p116
      %p118 = pneg %p117
      // Predicated region
      $region9: #{tpu_custom_call.1} parent=5 // pred_check
        _
      $region10: #{tpu_custom_call.1} parent=5 // pred_check_branch
        %120 = sbr.rel (%p117) target = $region12
      $region11: #{tpu_custom_call.1} parent=5 // pred_region
        %s121 = ssub.s32 %s13, 1
        // Predicated region
        $region13: #{tpu_custom_call.1} parent=11 // pred_check
          %p122 = pneg %p60
        $region14: #{tpu_custom_call.1} parent=11 // pred_check_branch
          %124 = sbr.rel (%p122) target = $region16
        $region15: #{tpu_custom_call.1} parent=11 // pred_region
          _
        $region16: #{tpu_custom_call.1} parent=11 // pred_fallthru
          _
        // Predicated region
        $region17: #{tpu_custom_call.1} parent=11 // pred_check
          %p125 = pneg %p81
        $region18: #{tpu_custom_call.1} parent=11 // pred_check_branch
          %127 = sbr.rel (%p125) target = $region20
        $region19: #{tpu_custom_call.1} parent=11 // pred_region
          %s129 = ssub.s32 12288, 12288
          %130 = vsyncadd [#allocation3], %s129
          %s131 = sshll.u32 [#allocation2], 4
          %s132 = int_to_ptr.vmem [resolvable:$true] %s131
          %137 = dma.hbm_to_vmem [thread:$0]  %s2, 12288, %s132, [#allocation3], 128, 128, 8
        $region20: #{tpu_custom_call.1} parent=11 // pred_fallthru
          _
      $region12: #{tpu_custom_call.1} parent=5 // pred_fallthru
        _
      %p138 = scmp.lt.s32.totalorder %s13, 2
      // Predicated region
      $region21: #{tpu_custom_call.1} parent=5 // pred_check
        %p139 = pneg %p138
      $region22: #{tpu_custom_call.1} parent=5 // pred_check_branch
        %141 = sbr.rel (%p139) target = $region24
      $region23: #{tpu_custom_call.1} parent=5 // pred_region
        // Predicated region
        $region25: #{tpu_custom_call.1} parent=23 // pred_check
          %p142 = pneg %p33
        $region26: #{tpu_custom_call.1} parent=23 // pred_check_branch
          %144 = sbr.rel (%p142) target = $region28
        $region27: #{tpu_custom_call.1} parent=23 // pred_region
          %s145 = smul.u32 16, %s13
          %p146 = scmp.lt.s32.totalorder %s145, 31
          %s147 = scalar_select %p146, %s145, 31
          %s148 = smul.addr %s147, 8
          %s149 = scalar_lea.vmem %s0, %s148
          %s150 = smul.u32 16, %s13
        $region28: #{tpu_custom_call.1} parent=23 // pred_fallthru
          _
      $region24: #{tpu_custom_call.1} parent=5 // pred_fallthru
        _
      %p151 = scmp.le.s32.totalorder 1, %s13
      %p152 = scmp.lt.s32.totalorder %s13, 3
      %p153 = pnand %p151, %p152
      %p154 = pneg %p153
      // Predicated region
      $region29: #{tpu_custom_call.1} parent=5 // pred_check
        _
      $region30: #{tpu_custom_call.1} parent=5 // pred_check_branch
        %156 = sbr.rel (%p153) target = $region32
      $region31: #{tpu_custom_call.1} parent=5 // pred_region
        %s157 = ssub.s32 %s13, 1
        // Predicated region
        $region33: #{tpu_custom_call.1} parent=31 // pred_check
          %p158 = pneg %p81
        $region34: #{tpu_custom_call.1} parent=31 // pred_check_branch
          %160 = sbr.rel (%p158) target = $region36
        $region35: #{tpu_custom_call.1} parent=31 // pred_region
          %161 = dma.done [#allocation3], 12288
        $region36: #{tpu_custom_call.1} parent=31 // pred_fallthru
          _
        %s162 = smul.u32 16, %s18
        %p163 = scmp.lt.s32.totalorder %s162, 31
        %s164 = scalar_select %p163, %s162, 31
        %s165 = smul.addr %s164, 8
        %s166 = scalar_lea.vmem %s0, %s165
        %p167 = pneg %p39
        %p168 = pneg %p36
        %p169 = pneg %p60
        %p170 = pneg %p57
        %p171 = pneg %p81
        %p172 = pneg %p78
        %p173 = pneg %p107
        %p174 = pneg %p104
        %s175 = sand.u32 %s94, 1
        %s176 = scalar_lea.sflag [#allocation4], %s175
        %s177 = sand.u32 %s94, 1
        %s178 = smul.addr %s177, 256
        %s179 = scalar_lea.vmem [#allocation5], %s178
        %s180 = smul.u32 16, %s18
        %p181 = scmp.lt.s32.totalorder %s180, 31
        %s182 = scalar_select %p181, %s180, 31
        %s183 = smul.addr %s182, 8
        %s184 = scalar_lea.vmem %s0, %s183
        %s185 = smul.u32 16, %s18
        %s186 = smul.u32 16, %s18
        %v188 = vld [vmem:[%s184] sm:$0xff]
        %v189 = vld [vmem:[%s184 + $0x8] sm:$0xff]
        %v190 = vld [vmem:[%s184 + $0x10] sm:$0xff]
        %v191 = vld [vmem:[%s184 + $0x18] sm:$0xff]
        %v192 = vld [vmem:[%s184 + $0x20] sm:$0xff]
        %v193 = vld [vmem:[%s184 + $0x28] sm:$0xff]
        %v194 = vld [vmem:[%s184 + $0x30] sm:$0xff]
        %v195 = vld [vmem:[%s184 + $0x38] sm:$0xff]
        %v196 = vld [vmem:[%s184 + $0x40] sm:$0xff]
        %v197 = vld [vmem:[%s184 + $0x48] sm:$0xff]
        %v198 = vld [vmem:[%s184 + $0x50] sm:$0xff]
        %v199 = vld [vmem:[%s184 + $0x58] sm:$0xff]
        %v200 = vld [vmem:[%s184 + $0x60] sm:$0xff]
        %v201 = vld [vmem:[%s184 + $0x68] sm:$0xff]
        %v202 = vld [vmem:[%s184 + $0x70] sm:$0xff]
        %v203 = vld [vmem:[%s184 + $0x78] sm:$0xff]
        %v204 = vpack.c.bf16 %v189, %v188
        %v205 = vpack.c.bf16 %v191, %v190
        %v206 = vpack.c.bf16 %v193, %v192
        %v207 = vpack.c.bf16 %v195, %v194
        %v208 = vpack.c.bf16 %v197, %v196
        %v209 = vpack.c.bf16 %v199, %v198
        %v210 = vpack.c.bf16 %v201, %v200
        %v211 = vpack.c.bf16 %v203, %v202
        %v212 = vld [vmem:[%s1] sm:$0xff]
        %v213 = vld [vmem:[%s1 + $0x8] sm:$0xff]
        %v214 = vld [vmem:[%s1 + $0x10] sm:$0xff]
        %v215 = vld [vmem:[%s1 + $0x18] sm:$0xff]
        %v220 = vunpack.c.l.b16 %v212
        %v221 = vunpack.c.h.b16 %v212
        %v222 = vunpack.c.l.b16 %v213
        %v223 = vunpack.c.h.b16 %v213
        %v224 = vunpack.c.l.b16 %v214
        %v225 = vunpack.c.h.b16 %v214
        %v226 = vunpack.c.l.b16 %v215
        %v227 = vunpack.c.h.b16 %v215
        %v228 = vpack.c.b16 %v222, %v220
        %v229 = vpack.c.b16 %v223, %v221
        %v230 = vpack.c.b16 %v226, %v224
        %v231 = vpack.c.b16 %v227, %v225
        %vm236 = vcmask 261120
        %v238 = vsel %vm236, %v204, 0
        %v241 = vsel %vm236, %v205, 0
        %v244 = vsel %vm236, %v206, 0
        %v247 = vsel %vm236, %v207, 0
        %v250 = vsel %vm236, %v208, 0
        %v253 = vsel %vm236, %v209, 0
        %v256 = vsel %vm236, %v210, 0
        %v259 = vsel %vm236, %v211, 0
        %261 = vmatprep.subr.bf16.mxu0 %v229
        %262 = vmatpush1.bf16.msra.mxu0 %v228
        %263 = vmatprep.subr.bf16.mxu0 %v231
        %264 = vmatpush1.bf16.msra.mxu0 %v230
        %265 = vmatprep.subr.bf16.mxu0 0
        %266 = vmatpush1.bf16.msra.mxu0 0
        %267 = vmatprep.subr.bf16.mxu0 0
        %268 = vmatpush1.bf16.msra.mxu0 0
        %269 = vmatprep.subr.bf16.mxu0 0
        %270 = vmatpush1.bf16.msra.mxu0 0
        %271 = vmatprep.subr.bf16.mxu0 0
        %272 = vmatpush1.bf16.msra.mxu0 0
        %273 = vmatprep.subr.bf16.mxu0 0
        %274 = vmatpush1.bf16.msra.mxu0 0
        %275 = vmatprep.subr.bf16.mxu0 0
        %276 = vmatpush1.bf16.msra.mxu0 0
        %277 = vmatprep.subr.bf16.mxu0 0
        %278 = vmatpush1.bf16.msra.mxu0 0
        %279 = vmatprep.subr.bf16.mxu0 0
        %280 = vmatpush1.bf16.msra.mxu0 0
        %281 = vmatprep.subr.bf16.mxu0 0
        %282 = vmatpush1.bf16.msra.mxu0 0
        %283 = vmatprep.subr.bf16.mxu0 0
        %284 = vmatpush1.bf16.msra.mxu0 0
        %285 = vmatprep.subr.bf16.mxu0 0
        %286 = vmatpush1.bf16.msra.mxu0 0
        %287 = vmatprep.subr.bf16.mxu0 0
        %288 = vmatpush1.bf16.msra.mxu0 0
        %289 = vmatprep.subr.bf16.mxu0 0
        %290 = vmatpush1.bf16.msra.mxu0 0
        %291 = vmatprep.subr.bf16.mxu0 0
        %292 = vmatpush1.bf16.msra.mxu0 0
        %293 = vmatprep.mubr.bf16.mxu0 0
        %294 = vmatmul.mubr.bf16.gmra.mrb[0].mxu0 %v238
        %v295 = vpop.f32.mrb[0].mxu0
        %v296 = vadd.f32 0.0, %v295
        %v297 = vpop.f32.mrb[0].mxu0
        %v298 = vadd.f32 0.0, %v297
        %v299 = vpop.f32.mrb[0].mxu0
        %v300 = vadd.f32 0.0, %v299
        %v301 = vpop.f32.mrb[0].mxu0
        %v302 = vadd.f32 0.0, %v301
        %303 = vmatprep.mubr.bf16.mxu0 0
        %304 = vmatmul.mubr.bf16.gmra.mrb[0].mxu0 %v241
        %v305 = vpop.f32.mrb[0].mxu0
        %v306 = vadd.f32 0.0, %v305
        %v307 = vpop.f32.mrb[0].mxu0
        %v308 = vadd.f32 0.0, %v307
        %v309 = vpop.f32.mrb[0].mxu0
        %v310 = vadd.f32 0.0, %v309
        %v311 = vpop.f32.mrb[0].mxu0
        %v312 = vadd.f32 0.0, %v311
        %313 = vmatprep.mubr.bf16.mxu0 0
        %314 = vmatmul.mubr.bf16.gmra.mrb[0].mxu0 %v244
        %v315 = vpop.f32.mrb[0].mxu0
        %v316 = vadd.f32 0.0, %v315
        %v317 = vpop.f32.mrb[0].mxu0
        %v318 = vadd.f32 0.0, %v317
        %v319 = vpop.f32.mrb[0].mxu0
        %v320 = vadd.f32 0.0, %v319
        %v321 = vpop.f32.mrb[0].mxu0
        %v322 = vadd.f32 0.0, %v321
        %323 = vmatprep.mubr.bf16.mxu0 0
        %324 = vmatmul.mubr.bf16.gmra.mrb[0].mxu0 %v247
        %v325 = vpop.f32.mrb[0].mxu0
        %v326 = vadd.f32 0.0, %v325
        %v327 = vpop.f32.mrb[0].mxu0
        %v328 = vadd.f32 0.0, %v327
        %v329 = vpop.f32.mrb[0].mxu0
        %v330 = vadd.f32 0.0, %v329
        %v331 = vpop.f32.mrb[0].mxu0
        %v332 = vadd.f32 0.0, %v331
        %333 = vmatprep.mubr.bf16.mxu0 0
        %334 = vmatmul.mubr.bf16.gmra.mrb[0].mxu0 %v250
        %v335 = vpop.f32.mrb[0].mxu0
        %v336 = vadd.f32 0.0, %v335
        %v337 = vpop.f32.mrb[0].mxu0
        %v338 = vadd.f32 0.0, %v337
        %v339 = vpop.f32.mrb[0].mxu0
        %v340 = vadd.f32 0.0, %v339
        %v341 = vpop.f32.mrb[0].mxu0
        %v342 = vadd.f32 0.0, %v341
        %343 = vmatprep.mubr.bf16.mxu0 0
        %344 = vmatmul.mubr.bf16.gmra.mrb[0].mxu0 %v253
        %v345 = vpop.f32.mrb[0].mxu0
        %v346 = vadd.f32 0.0, %v345
        %v347 = vpop.f32.mrb[0].mxu0
        %v348 = vadd.f32 0.0, %v347
        %v349 = vpop.f32.mrb[0].mxu0
        %v350 = vadd.f32 0.0, %v349
        %v351 = vpop.f32.mrb[0].mxu0
        %v352 = vadd.f32 0.0, %v351
        %353 = vmatprep.mubr.bf16.mxu0 0
        %354 = vmatmul.mubr.bf16.gmra.mrb[0].mxu0 %v256
        %v355 = vpop.f32.mrb[0].mxu0
        %v356 = vadd.f32 0.0, %v355
        %v357 = vpop.f32.mrb[0].mxu0
        %v358 = vadd.f32 0.0, %v357
        %v359 = vpop.f32.mrb[0].mxu0
        %v360 = vadd.f32 0.0, %v359
        %v361 = vpop.f32.mrb[0].mxu0
        %v362 = vadd.f32 0.0, %v361
        %363 = vmatprep.mubr.bf16.mxu0 0
        %364 = vmatmul.mubr.bf16.gmra.mrb[0].mxu0 %v259
        %v365 = vpop.f32.mrb[0].mxu0
        %v366 = vadd.f32 0.0, %v365
        %v367 = vpop.f32.mrb[0].mxu0
        %v368 = vadd.f32 0.0, %v367
        %v369 = vpop.f32.mrb[0].mxu0
        %v370 = vadd.f32 0.0, %v369
        %v371 = vpop.f32.mrb[0].mxu0
        %v372 = vadd.f32 0.0, %v371
        %373 = vdwg.mxu0
        %v374 = vpack.c.bf16 %v300, %v296
        %v375 = vpack.c.bf16 %v302, %v298
        %v376 = vpack.c.bf16 %v310, %v306
        %v377 = vpack.c.bf16 %v312, %v308
        %v378 = vpack.c.bf16 %v320, %v316
        %v379 = vpack.c.bf16 %v322, %v318
        %v380 = vpack.c.bf16 %v330, %v326
        %v381 = vpack.c.bf16 %v332, %v328
        %v382 = vpack.c.bf16 %v340, %v336
        %v383 = vpack.c.bf16 %v342, %v338
        %v384 = vpack.c.bf16 %v350, %v346
        %v385 = vpack.c.bf16 %v352, %v348
        %v386 = vpack.c.bf16 %v360, %v356
        %v387 = vpack.c.bf16 %v362, %v358
        %v388 = vpack.c.bf16 %v370, %v366
        %v389 = vpack.c.bf16 %v372, %v368
        %v390 = vld [vmem:[#allocation2] sm:$0xff]
        %v391 = vld [vmem:[#allocation2 + $0x8] sm:$0xff]
        %v392 = vld [vmem:[#allocation2 + $0x10] sm:$0xff]
        %v393 = vld [vmem:[#allocation2 + $0x18] sm:$0xff]
        %v394 = vld [vmem:[#allocation2 + $0x20] sm:$0xff]
        %v395 = vld [vmem:[#allocation2 + $0x28] sm:$0xff]
        %v396 = vld [vmem:[#allocation2 + $0x30] sm:$0xff]
        %v397 = vld [vmem:[#allocation2 + $0x38] sm:$0xff]
        %v398 = vld [vmem:[#allocation2 + $0x40] sm:$0xff]
        %v399 = vld [vmem:[#allocation2 + $0x48] sm:$0xff]
        %v400 = vld [vmem:[#allocation2 + $0x50] sm:$0xff]
        %v401 = vld [vmem:[#allocation2 + $0x58] sm:$0xff]
        %v402 = vld [vmem:[#allocation2 + $0x60] sm:$0xff]
        %v403 = vld [vmem:[#allocation2 + $0x68] sm:$0xff]
        %v404 = vld [vmem:[#allocation2 + $0x70] sm:$0xff]
        %v405 = vld [vmem:[#allocation2 + $0x78] sm:$0xff]
        %v406 = vld [vmem:[#allocation2 + $0x80] sm:$0xff]
        %v407 = vld [vmem:[#allocation2 + $0x88] sm:$0xff]
        %v408 = vld [vmem:[#allocation2 + $0x90] sm:$0xff]
        %v409 = vld [vmem:[#allocation2 + $0x98] sm:$0xff]
        %v410 = vld [vmem:[#allocation2 + $0xa0] sm:$0xff]
        %v411 = vld [vmem:[#allocation2 + $0xa8] sm:$0xff]
        %v412 = vld [vmem:[#allocation2 + $0xb0] sm:$0xff]
        %v413 = vld [vmem:[#allocation2 + $0xb8] sm:$0xff]
        %v414 = vld [vmem:[#allocation2 + $0xc0] sm:$0xff]
        %v415 = vld [vmem:[#allocation2 + $0xc8] sm:$0xff]
        %v416 = vld [vmem:[#allocation2 + $0xd0] sm:$0xff]
        %v417 = vld [vmem:[#allocation2 + $0xd8] sm:$0xff]
        %v418 = vld [vmem:[#allocation2 + $0xe0] sm:$0xff]
        %v419 = vld [vmem:[#allocation2 + $0xe8] sm:$0xff]
        %v420 = vld [vmem:[#allocation2 + $0xf0] sm:$0xff]
        %v421 = vld [vmem:[#allocation2 + $0xf8] sm:$0xff]
        %v454 = vunpack.c.l.b16 %v390
        %v455 = vunpack.c.h.b16 %v390
        %v456 = vunpack.c.l.b16 %v391
        %v457 = vunpack.c.h.b16 %v391
        %v458 = vunpack.c.l.b16 %v392
        %v459 = vunpack.c.h.b16 %v392
        %v460 = vunpack.c.l.b16 %v393
        %v461 = vunpack.c.h.b16 %v393
        %v462 = vunpack.c.l.b16 %v394
        %v463 = vunpack.c.h.b16 %v394
        %v464 = vunpack.c.l.b16 %v395
        %v465 = vunpack.c.h.b16 %v395
        %v466 = vunpack.c.l.b16 %v396
        %v467 = vunpack.c.h.b16 %v396
        %v468 = vunpack.c.l.b16 %v397
        %v469 = vunpack.c.h.b16 %v397
        %v470 = vunpack.c.l.b16 %v398
        %v471 = vunpack.c.h.b16 %v398
        %v472 = vunpack.c.l.b16 %v399
        %v473 = vunpack.c.h.b16 %v399
        %v474 = vunpack.c.l.b16 %v400
        %v475 = vunpack.c.h.b16 %v400
        %v476 = vunpack.c.l.b16 %v401
        %v477 = vunpack.c.h.b16 %v401
        %v478 = vunpack.c.l.b16 %v402
        %v479 = vunpack.c.h.b16 %v402
        %v480 = vunpack.c.l.b16 %v403
        %v481 = vunpack.c.h.b16 %v403
        %v482 = vunpack.c.l.b16 %v404
        %v483 = vunpack.c.h.b16 %v404
        %v484 = vunpack.c.l.b16 %v405
        %v485 = vunpack.c.h.b16 %v405
        %v486 = vunpack.c.l.b16 %v406
        %v487 = vunpack.c.h.b16 %v406
        %v488 = vunpack.c.l.b16 %v407
        %v489 = vunpack.c.h.b16 %v407
        %v490 = vunpack.c.l.b16 %v408
        %v491 = vunpack.c.h.b16 %v408
        %v492 = vunpack.c.l.b16 %v409
        %v493 = vunpack.c.h.b16 %v409
        %v494 = vunpack.c.l.b16 %v410
        %v495 = vunpack.c.h.b16 %v410
        %v496 = vunpack.c.l.b16 %v411
        %v497 = vunpack.c.h.b16 %v411
        %v498 = vunpack.c.l.b16 %v412
        %v499 = vunpack.c.h.b16 %v412
        %v500 = vunpack.c.l.b16 %v413
        %v501 = vunpack.c.h.b16 %v413
        %v502 = vunpack.c.l.b16 %v414
        %v503 = vunpack.c.h.b16 %v414
        %v504 = vunpack.c.l.b16 %v415
        %v505 = vunpack.c.h.b16 %v415
        %v506 = vunpack.c.l.b16 %v416
        %v507 = vunpack.c.h.b16 %v416
        %v508 = vunpack.c.l.b16 %v417
        %v509 = vunpack.c.h.b16 %v417
        %v510 = vunpack.c.l.b16 %v418
        %v511 = vunpack.c.h.b16 %v418
        %v512 = vunpack.c.l.b16 %v419
        %v513 = vunpack.c.h.b16 %v419
        %v514 = vunpack.c.l.b16 %v420
        %v515 = vunpack.c.h.b16 %v420
        %v516 = vunpack.c.l.b16 %v421
        %v517 = vunpack.c.h.b16 %v421
        %v518 = vpack.c.b16 %v456, %v454
        %v519 = vpack.c.b16 %v457, %v455
        %v520 = vpack.c.b16 %v460, %v458
        %v521 = vpack.c.b16 %v461, %v459
        %v522 = vpack.c.b16 %v464, %v462
        %v523 = vpack.c.b16 %v465, %v463
        %v524 = vpack.c.b16 %v468, %v466
        %v525 = vpack.c.b16 %v469, %v467
        %v526 = vpack.c.b16 %v472, %v470
        %v527 = vpack.c.b16 %v473, %v471
        %v528 = vpack.c.b16 %v476, %v474
        %v529 = vpack.c.b16 %v477, %v475
        %v530 = vpack.c.b16 %v480, %v478
        %v531 = vpack.c.b16 %v481, %v479
        %v532 = vpack.c.b16 %v484, %v482
        %v533 = vpack.c.b16 %v485, %v483
        %v534 = vpack.c.b16 %v488, %v486
        %v535 = vpack.c.b16 %v489, %v487
        %v536 = vpack.c.b16 %v492, %v490
        %v537 = vpack.c.b16 %v493, %v491
        %v538 = vpack.c.b16 %v496, %v494
        %v539 = vpack.c.b16 %v497, %v495
        %v540 = vpack.c.b16 %v500, %v498
        %v541 = vpack.c.b16 %v501, %v499
        %v542 = vpack.c.b16 %v504, %v502
        %v543 = vpack.c.b16 %v505, %v503
        %v544 = vpack.c.b16 %v508, %v506
        %v545 = vpack.c.b16 %v509, %v507
        %v546 = vpack.c.b16 %v512, %v510
        %v547 = vpack.c.b16 %v513, %v511
        %v548 = vpack.c.b16 %v516, %v514
        %v549 = vpack.c.b16 %v517, %v515
        %582 = vmatprep.subr.bf16.mxu0 %v519
        %583 = vmatpush1.bf16.msra.mxu0 %v518
        %584 = vmatprep.subr.bf16.mxu0 %v521
        %585 = vmatpush1.bf16.msra.mxu0 %v520
        %586 = vmatprep.subr.bf16.mxu0 %v523
        %587 = vmatpush1.bf16.msra.mxu0 %v522
        %588 = vmatprep.subr.bf16.mxu0 %v525
        %589 = vmatpush1.bf16.msra.mxu0 %v524
        %590 = vmatprep.subr.bf16.mxu0 %v527
        %591 = vmatpush1.bf16.msra.mxu0 %v526
        %592 = vmatprep.subr.bf16.mxu0 %v529
        %593 = vmatpush1.bf16.msra.mxu0 %v528
        %594 = vmatprep.subr.bf16.mxu0 %v531
        %595 = vmatpush1.bf16.msra.mxu0 %v530
        %596 = vmatprep.subr.bf16.mxu0 %v533
        %597 = vmatpush1.bf16.msra.mxu0 %v532
        %598 = vmatprep.subr.bf16.mxu0 %v535
        %599 = vmatpush1.bf16.msra.mxu0 %v534
        %600 = vmatprep.subr.bf16.mxu0 %v537
        %601 = vmatpush1.bf16.msra.mxu0 %v536
        %602 = vmatprep.subr.bf16.mxu0 %v539
        %603 = vmatpush1.bf16.msra.mxu0 %v538
        %604 = vmatprep.subr.bf16.mxu0 %v541
        %605 = vmatpush1.bf16.msra.mxu0 %v540
        %606 = vmatprep.subr.bf16.mxu0 %v543
        %607 = vmatpush1.bf16.msra.mxu0 %v542
        %608 = vmatprep.subr.bf16.mxu0 %v545
        %609 = vmatpush1.bf16.msra.mxu0 %v544
        %610 = vmatprep.subr.bf16.mxu0 %v547
        %611 = vmatpush1.bf16.msra.mxu0 %v546
        %612 = vmatprep.subr.bf16.mxu0 %v549
        %613 = vmatpush1.bf16.msra.mxu0 %v548
        %614 = vmatprep.mubr.bf16.mxu0 %v375
        %615 = vmatmul.mubr.bf16.gmra.mrb[0].mxu0 %v374
        %v616 = vpop.f32.mrb[0].mxu0
        %v617 = vadd.f32 0.0, %v616
        %v618 = vpop.f32.mrb[0].mxu0
        %v619 = vadd.f32 0.0, %v618
        %v620 = vpop.f32.mrb[0].mxu0
        %v621 = vadd.f32 0.0, %v620
        %v622 = vpop.f32.mrb[0].mxu0
        %v623 = vadd.f32 0.0, %v622
        %624 = vmatprep.mubr.bf16.mxu0 %v377
        %625 = vmatmul.mubr.bf16.gmra.mrb[0].mxu0 %v376
        %v626 = vpop.f32.mrb[0].mxu0
        %v627 = vadd.f32 0.0, %v626
        %v628 = vpop.f32.mrb[0].mxu0
        %v629 = vadd.f32 0.0, %v628
        %v630 = vpop.f32.mrb[0].mxu0
        %v631 = vadd.f32 0.0, %v630
        %v632 = vpop.f32.mrb[0].mxu0
        %v633 = vadd.f32 0.0, %v632
        %634 = vmatprep.mubr.bf16.mxu0 %v379
        %635 = vmatmul.mubr.bf16.gmra.mrb[0].mxu0 %v378
        %v636 = vpop.f32.mrb[0].mxu0
        %v637 = vadd.f32 0.0, %v636
        %v638 = vpop.f32.mrb[0].mxu0
        %v639 = vadd.f32 0.0, %v638
        %v640 = vpop.f32.mrb[0].mxu0
        %v641 = vadd.f32 0.0, %v640
        %v642 = vpop.f32.mrb[0].mxu0
        %v643 = vadd.f32 0.0, %v642
        %644 = vmatprep.mubr.bf16.mxu0 %v381
        %645 = vmatmul.mubr.bf16.gmra.mrb[0].mxu0 %v380
        %v646 = vpop.f32.mrb[0].mxu0
        %v647 = vadd.f32 0.0, %v646
        %v648 = vpop.f32.mrb[0].mxu0
        %v649 = vadd.f32 0.0, %v648
        %v650 = vpop.f32.mrb[0].mxu0
        %v651 = vadd.f32 0.0, %v650
        %v652 = vpop.f32.mrb[0].mxu0
        %v653 = vadd.f32 0.0, %v652
        %654 = vmatprep.mubr.bf16.mxu0 %v383
        %655 = vmatmul.mubr.bf16.gmra.mrb[0].mxu0 %v382
        %v656 = vpop.f32.mrb[0].mxu0
        %v657 = vadd.f32 0.0, %v656
        %v658 = vpop.f32.mrb[0].mxu0
        %v659 = vadd.f32 0.0, %v658
        %v660 = vpop.f32.mrb[0].mxu0
        %v661 = vadd.f32 0.0, %v660
        %v662 = vpop.f32.mrb[0].mxu0
        %v663 = vadd.f32 0.0, %v662
        %664 = vmatprep.mubr.bf16.mxu0 %v385
        %665 = vmatmul.mubr.bf16.gmra.mrb[0].mxu0 %v384
        %v666 = vpop.f32.mrb[0].mxu0
        %v667 = vadd.f32 0.0, %v666
        %v668 = vpop.f32.mrb[0].mxu0
        %v669 = vadd.f32 0.0, %v668
        %v670 = vpop.f32.mrb[0].mxu0
        %v671 = vadd.f32 0.0, %v670
        %v672 = vpop.f32.mrb[0].mxu0
        %v673 = vadd.f32 0.0, %v672
        %674 = vmatprep.mubr.bf16.mxu0 %v387
        %675 = vmatmul.mubr.bf16.gmra.mrb[0].mxu0 %v386
        %v676 = vpop.f32.mrb[0].mxu0
        %v677 = vadd.f32 0.0, %v676
        %v678 = vpop.f32.mrb[0].mxu0
        %v679 = vadd.f32 0.0, %v678
        %v680 = vpop.f32.mrb[0].mxu0
        %v681 = vadd.f32 0.0, %v680
        %v682 = vpop.f32.mrb[0].mxu0
        %v683 = vadd.f32 0.0, %v682
        %684 = vmatprep.mubr.bf16.mxu0 %v389
        %685 = vmatmul.mubr.bf16.gmra.mrb[0].mxu0 %v388
        %v686 = vpop.f32.mrb[0].mxu0
        %v687 = vadd.f32 0.0, %v686
        %v688 = vpop.f32.mrb[0].mxu0
        %v689 = vadd.f32 0.0, %v688
        %v690 = vpop.f32.mrb[0].mxu0
        %v691 = vadd.f32 0.0, %v690
        %v692 = vpop.f32.mrb[0].mxu0
        %v693 = vadd.f32 0.0, %v692
        %694 = vdwg.mxu0
        %v695 = vtanh.pop %v617
        %v696 = vtanh.pop %v619
        %v697 = vtanh.pop %v621
        %v698 = vtanh.pop %v623
        %v699 = vtanh.pop %v627
        %v700 = vtanh.pop %v629
        %v701 = vtanh.pop %v631
        %v702 = vtanh.pop %v633
        %v703 = vtanh.pop %v637
        %v704 = vtanh.pop %v639
        %v705 = vtanh.pop %v641
        %v706 = vtanh.pop %v643
        %v707 = vtanh.pop %v647
        %v708 = vtanh.pop %v649
        %v709 = vtanh.pop %v651
        %v710 = vtanh.pop %v653
        %v711 = vtanh.pop %v657
        %v712 = vtanh.pop %v659
        %v713 = vtanh.pop %v661
        %v714 = vtanh.pop %v663
        %v715 = vtanh.pop %v667
        %v716 = vtanh.pop %v669
        %v717 = vtanh.pop %v671
        %v718 = vtanh.pop %v673
        %v719 = vtanh.pop %v677
        %v720 = vtanh.pop %v679
        %v721 = vtanh.pop %v681
        %v722 = vtanh.pop %v683
        %v723 = vtanh.pop %v687
        %v724 = vtanh.pop %v689
        %v725 = vtanh.pop %v691
        %v726 = vtanh.pop %v693
        %v727 = vadd.f32 %v695, %v296
        %v728 = vadd.f32 %v696, %v298
        %v729 = vadd.f32 %v697, %v300
        %v730 = vadd.f32 %v698, %v302
        %v731 = vadd.f32 %v699, %v306
        %v732 = vadd.f32 %v700, %v308
        %v733 = vadd.f32 %v701, %v310
        %v734 = vadd.f32 %v702, %v312
        %v735 = vadd.f32 %v703, %v316
        %v736 = vadd.f32 %v704, %v318
        %v737 = vadd.f32 %v705, %v320
        %v738 = vadd.f32 %v706, %v322
        %v739 = vadd.f32 %v707, %v326
        %v740 = vadd.f32 %v708, %v328
        %v741 = vadd.f32 %v709, %v330
        %v742 = vadd.f32 %v710, %v332
        %v743 = vadd.f32 %v711, %v336
        %v744 = vadd.f32 %v712, %v338
        %v745 = vadd.f32 %v713, %v340
        %v746 = vadd.f32 %v714, %v342
        %v747 = vadd.f32 %v715, %v346
        %v748 = vadd.f32 %v716, %v348
        %v749 = vadd.f32 %v717, %v350
        %v750 = vadd.f32 %v718, %v352
        %v751 = vadd.f32 %v719, %v356
        %v752 = vadd.f32 %v720, %v358
        %v753 = vadd.f32 %v721, %v360
        %v754 = vadd.f32 %v722, %v362
        %v755 = vadd.f32 %v723, %v366
        %v756 = vadd.f32 %v724, %v368
        %v757 = vadd.f32 %v725, %v370
        %v758 = vadd.f32 %v726, %v372
        %v759 = vpack.c.bf16 %v729, %v727
        %v760 = vpack.c.bf16 %v730, %v728
        %v761 = vpack.c.bf16 %v733, %v731
        %v762 = vpack.c.bf16 %v734, %v732
        %v763 = vpack.c.bf16 %v737, %v735
        %v764 = vpack.c.bf16 %v738, %v736
        %v765 = vpack.c.bf16 %v741, %v739
        %v766 = vpack.c.bf16 %v742, %v740
        %v767 = vpack.c.bf16 %v745, %v743
        %v768 = vpack.c.bf16 %v746, %v744
        %v769 = vpack.c.bf16 %v749, %v747
        %v770 = vpack.c.bf16 %v750, %v748
        %v771 = vpack.c.bf16 %v753, %v751
        %v772 = vpack.c.bf16 %v754, %v752
        %v773 = vpack.c.bf16 %v757, %v755
        %v774 = vpack.c.bf16 %v758, %v756
        %s775 = scalar_lea.vmem [#allocation2], 256
        %v776 = vld [vmem:[%s775] sm:$0xff]
        %v777 = vld [vmem:[%s775 + $0x8] sm:$0xff]
        %v778 = vld [vmem:[%s775 + $0x10] sm:$0xff]
        %v779 = vld [vmem:[%s775 + $0x18] sm:$0xff]
        %v780 = vld [vmem:[%s775 + $0x20] sm:$0xff]
        %v781 = vld [vmem:[%s775 + $0x28] sm:$0xff]
        %v782 = vld [vmem:[%s775 + $0x30] sm:$0xff]
        %v783 = vld [vmem:[%s775 + $0x38] sm:$0xff]
        %v784 = vld [vmem:[%s775 + $0x40] sm:$0xff]
        %v785 = vld [vmem:[%s775 + $0x48] sm:$0xff]
        %v786 = vld [vmem:[%s775 + $0x50] sm:$0xff]
        %v787 = vld [vmem:[%s775 + $0x58] sm:$0xff]
        %v788 = vld [vmem:[%s775 + $0x60] sm:$0xff]
        %v789 = vld [vmem:[%s775 + $0x68] sm:$0xff]
        %v790 = vld [vmem:[%s775 + $0x70] sm:$0xff]
        %v791 = vld [vmem:[%s775 + $0x78] sm:$0xff]
        %v792 = vld [vmem:[%s775 + $0x80] sm:$0xff]
        %v793 = vld [vmem:[%s775 + $0x88] sm:$0xff]
        %v794 = vld [vmem:[%s775 + $0x90] sm:$0xff]
        %v795 = vld [vmem:[%s775 + $0x98] sm:$0xff]
        %v796 = vld [vmem:[%s775 + $0xa0] sm:$0xff]
        %v797 = vld [vmem:[%s775 + $0xa8] sm:$0xff]
        %v798 = vld [vmem:[%s775 + $0xb0] sm:$0xff]
        %v799 = vld [vmem:[%s775 + $0xb8] sm:$0xff]
        %v800 = vld [vmem:[%s775 + $0xc0] sm:$0xff]
        %v801 = vld [vmem:[%s775 + $0xc8] sm:$0xff]
        %v802 = vld [vmem:[%s775 + $0xd0] sm:$0xff]
        %v803 = vld [vmem:[%s775 + $0xd8] sm:$0xff]
        %v804 = vld [vmem:[%s775 + $0xe0] sm:$0xff]
        %v805 = vld [vmem:[%s775 + $0xe8] sm:$0xff]
        %v806 = vld [vmem:[%s775 + $0xf0] sm:$0xff]
        %v807 = vld [vmem:[%s775 + $0xf8] sm:$0xff]
        %v840 = vunpack.c.l.b16 %v776
        %v841 = vunpack.c.h.b16 %v776
        %v842 = vunpack.c.l.b16 %v777
        %v843 = vunpack.c.h.b16 %v777
        %v844 = vunpack.c.l.b16 %v778
        %v845 = vunpack.c.h.b16 %v778
        %v846 = vunpack.c.l.b16 %v779
        %v847 = vunpack.c.h.b16 %v779
        %v848 = vunpack.c.l.b16 %v780
        %v849 = vunpack.c.h.b16 %v780
        %v850 = vunpack.c.l.b16 %v781
        %v851 = vunpack.c.h.b16 %v781
        %v852 = vunpack.c.l.b16 %v782
        %v853 = vunpack.c.h.b16 %v782
        %v854 = vunpack.c.l.b16 %v783
        %v855 = vunpack.c.h.b16 %v783
        %v856 = vunpack.c.l.b16 %v784
        %v857 = vunpack.c.h.b16 %v784
        %v858 = vunpack.c.l.b16 %v785
        %v859 = vunpack.c.h.b16 %v785
        %v860 = vunpack.c.l.b16 %v786
        %v861 = vunpack.c.h.b16 %v786
        %v862 = vunpack.c.l.b16 %v787
        %v863 = vunpack.c.h.b16 %v787
        %v864 = vunpack.c.l.b16 %v788
        %v865 = vunpack.c.h.b16 %v788
        %v866 = vunpack.c.l.b16 %v789
        %v867 = vunpack.c.h.b16 %v789
        %v868 = vunpack.c.l.b16 %v790
        %v869 = vunpack.c.h.b16 %v790
        %v870 = vunpack.c.l.b16 %v791
        %v871 = vunpack.c.h.b16 %v791
        %v872 = vunpack.c.l.b16 %v792
        %v873 = vunpack.c.h.b16 %v792
        %v874 = vunpack.c.l.b16 %v793
        %v875 = vunpack.c.h.b16 %v793
        %v876 = vunpack.c.l.b16 %v794
        %v877 = vunpack.c.h.b16 %v794
        %v878 = vunpack.c.l.b16 %v795
        %v879 = vunpack.c.h.b16 %v795
        %v880 = vunpack.c.l.b16 %v796
        %v881 = vunpack.c.h.b16 %v796
        %v882 = vunpack.c.l.b16 %v797
        %v883 = vunpack.c.h.b16 %v797
        %v884 = vunpack.c.l.b16 %v798
        %v885 = vunpack.c.h.b16 %v798
        %v886 = vunpack.c.l.b16 %v799
        %v887 = vunpack.c.h.b16 %v799
        %v888 = vunpack.c.l.b16 %v800
        %v889 = vunpack.c.h.b16 %v800
        %v890 = vunpack.c.l.b16 %v801
        %v891 = vunpack.c.h.b16 %v801
        %v892 = vunpack.c.l.b16 %v802
        %v893 = vunpack.c.h.b16 %v802
        %v894 = vunpack.c.l.b16 %v803
        %v895 = vunpack.c.h.b16 %v803
        %v896 = vunpack.c.l.b16 %v804
        %v897 = vunpack.c.h.b16 %v804
        %v898 = vunpack.c.l.b16 %v805
        %v899 = vunpack.c.h.b16 %v805
        %v900 = vunpack.c.l.b16 %v806
        %v901 = vunpack.c.h.b16 %v806
        %v902 = vunpack.c.l.b16 %v807
        %v903 = vunpack.c.h.b16 %v807
        %v904 = vpack.c.b16 %v842, %v840
        %v905 = vpack.c.b16 %v843, %v841
        %v906 = vpack.c.b16 %v846, %v844
        %v907 = vpack.c.b16 %v847, %v845
        %v908 = vpack.c.b16 %v850, %v848
        %v909 = vpack.c.b16 %v851, %v849
        %v910 = vpack.c.b16 %v854, %v852
        %v911 = vpack.c.b16 %v855, %v853
        %v912 = vpack.c.b16 %v858, %v856
        %v913 = vpack.c.b16 %v859, %v857
        %v914 = vpack.c.b16 %v862, %v860
        %v915 = vpack.c.b16 %v863, %v861
        %v916 = vpack.c.b16 %v866, %v864
        %v917 = vpack.c.b16 %v867, %v865
        %v918 = vpack.c.b16 %v870, %v868
        %v919 = vpack.c.b16 %v871, %v869
        %v920 = vpack.c.b16 %v874, %v872
        %v921 = vpack.c.b16 %v875, %v873
        %v922 = vpack.c.b16 %v878, %v876
        %v923 = vpack.c.b16 %v879, %v877
        %v924 = vpack.c.b16 %v882, %v880
        %v925 = vpack.c.b16 %v883, %v881
        %v926 = vpack.c.b16 %v886, %v884
        %v927 = vpack.c.b16 %v887, %v885
        %v928 = vpack.c.b16 %v890, %v888
        %v929 = vpack.c.b16 %v891, %v889
        %v930 = vpack.c.b16 %v894, %v892
        %v931 = vpack.c.b16 %v895, %v893
        %v932 = vpack.c.b16 %v898, %v896
        %v933 = vpack.c.b16 %v899, %v897
        %v934 = vpack.c.b16 %v902, %v900
        %v935 = vpack.c.b16 %v903, %v901
        %968 = vmatprep.subr.bf16.mxu0 %v905
        %969 = vmatpush1.bf16.msra.mxu0 %v904
        %970 = vmatprep.subr.bf16.mxu0 %v907
        %971 = vmatpush1.bf16.msra.mxu0 %v906
        %972 = vmatprep.subr.bf16.mxu0 %v909
        %973 = vmatpush1.bf16.msra.mxu0 %v908
        %974 = vmatprep.subr.bf16.mxu0 %v911
        %975 = vmatpush1.bf16.msra.mxu0 %v910
        %976 = vmatprep.subr.bf16.mxu0 %v913
        %977 = vmatpush1.bf16.msra.mxu0 %v912
        %978 = vmatprep.subr.bf16.mxu0 %v915
        %979 = vmatpush1.bf16.msra.mxu0 %v914
        %980 = vmatprep.subr.bf16.mxu0 %v917
        %981 = vmatpush1.bf16.msra.mxu0 %v916
        %982 = vmatprep.subr.bf16.mxu0 %v919
        %983 = vmatpush1.bf16.msra.mxu0 %v918
        %984 = vmatprep.subr.bf16.mxu0 %v921
        %985 = vmatpush1.bf16.msra.mxu0 %v920
        %986 = vmatprep.subr.bf16.mxu0 %v923
        %987 = vmatpush1.bf16.msra.mxu0 %v922
        %988 = vmatprep.subr.bf16.mxu0 %v925
        %989 = vmatpush1.bf16.msra.mxu0 %v924
        %990 = vmatprep.subr.bf16.mxu0 %v927
        %991 = vmatpush1.bf16.msra.mxu0 %v926
        %992 = vmatprep.subr.bf16.mxu0 %v929
        %993 = vmatpush1.bf16.msra.mxu0 %v928
        %994 = vmatprep.subr.bf16.mxu0 %v931
        %995 = vmatpush1.bf16.msra.mxu0 %v930
        %996 = vmatprep.subr.bf16.mxu0 %v933
        %997 = vmatpush1.bf16.msra.mxu0 %v932
        %998 = vmatprep.subr.bf16.mxu0 %v935
        %999 = vmatpush1.bf16.msra.mxu0 %v934
        %1000 = vmatprep.mubr.bf16.mxu0 %v760
        %1001 = vmatmul.mubr.bf16.gmra.mrb[0].mxu0 %v759
        %v1002 = vpop.f32.mrb[0].mxu0
        %v1003 = vadd.f32 0.0, %v1002
        %v1004 = vpop.f32.mrb[0].mxu0
        %v1005 = vadd.f32 0.0, %v1004
        %v1006 = vpop.f32.mrb[0].mxu0
        %v1007 = vadd.f32 0.0, %v1006
        %v1008 = vpop.f32.mrb[0].mxu0
        %v1009 = vadd.f32 0.0, %v1008
        %1010 = vmatprep.mubr.bf16.mxu0 %v762
        %1011 = vmatmul.mubr.bf16.gmra.mrb[0].mxu0 %v761
        %v1012 = vpop.f32.mrb[0].mxu0
        %v1013 = vadd.f32 0.0, %v1012
        %v1014 = vpop.f32.mrb[0].mxu0
        %v1015 = vadd.f32 0.0, %v1014
        %v1016 = vpop.f32.mrb[0].mxu0
        %v1017 = vadd.f32 0.0, %v1016
        %v1018 = vpop.f32.mrb[0].mxu0
        %v1019 = vadd.f32 0.0, %v1018
        %1020 = vmatprep.mubr.bf16.mxu0 %v764
        %1021 = vmatmul.mubr.bf16.gmra.mrb[0].mxu0 %v763
        %v1022 = vpop.f32.mrb[0].mxu0
        %v1023 = vadd.f32 0.0, %v1022
        %v1024 = vpop.f32.mrb[0].mxu0
        %v1025 = vadd.f32 0.0, %v1024
        %v1026 = vpop.f32.mrb[0].mxu0
        %v1027 = vadd.f32 0.0, %v1026
        %v1028 = vpop.f32.mrb[0].mxu0
        %v1029 = vadd.f32 0.0, %v1028
        %1030 = vmatprep.mubr.bf16.mxu0 %v766
        %1031 = vmatmul.mubr.bf16.gmra.mrb[0].mxu0 %v765
        %v1032 = vpop.f32.mrb[0].mxu0
        %v1033 = vadd.f32 0.0, %v1032
        %v1034 = vpop.f32.mrb[0].mxu0
        %v1035 = vadd.f32 0.0, %v1034
        %v1036 = vpop.f32.mrb[0].mxu0
        %v1037 = vadd.f32 0.0, %v1036
        %v1038 = vpop.f32.mrb[0].mxu0
        %v1039 = vadd.f32 0.0, %v1038
        %1040 = vmatprep.mubr.bf16.mxu0 %v768
        %1041 = vmatmul.mubr.bf16.gmra.mrb[0].mxu0 %v767
        %v1042 = vpop.f32.mrb[0].mxu0
        %v1043 = vadd.f32 0.0, %v1042
        %v1044 = vpop.f32.mrb[0].mxu0
        %v1045 = vadd.f32 0.0, %v1044
        %v1046 = vpop.f32.mrb[0].mxu0
        %v1047 = vadd.f32 0.0, %v1046
        %v1048 = vpop.f32.mrb[0].mxu0
        %v1049 = vadd.f32 0.0, %v1048
        %1050 = vmatprep.mubr.bf16.mxu0 %v770
        %1051 = vmatmul.mubr.bf16.gmra.mrb[0].mxu0 %v769
        %v1052 = vpop.f32.mrb[0].mxu0
        %v1053 = vadd.f32 0.0, %v1052
        %v1054 = vpop.f32.mrb[0].mxu0
        %v1055 = vadd.f32 0.0, %v1054
        %v1056 = vpop.f32.mrb[0].mxu0
        %v1057 = vadd.f32 0.0, %v1056
        %v1058 = vpop.f32.mrb[0].mxu0
        %v1059 = vadd.f32 0.0, %v1058
        %1060 = vmatprep.mubr.bf16.mxu0 %v772
        %1061 = vmatmul.mubr.bf16.gmra.mrb[0].mxu0 %v771
        %v1062 = vpop.f32.mrb[0].mxu0
        %v1063 = vadd.f32 0.0, %v1062
        %v1064 = vpop.f32.mrb[0].mxu0
        %v1065 = vadd.f32 0.0, %v1064
        %v1066 = vpop.f32.mrb[0].mxu0
        %v1067 = vadd.f32 0.0, %v1066
        %v1068 = vpop.f32.mrb[0].mxu0
        %v1069 = vadd.f32 0.0, %v1068
        %1070 = vmatprep.mubr.bf16.mxu0 %v774
        %1071 = vmatmul.mubr.bf16.gmra.mrb[0].mxu0 %v773
        %v1072 = vpop.f32.mrb[0].mxu0
        %v1073 = vadd.f32 0.0, %v1072
        %v1074 = vpop.f32.mrb[0].mxu0
        %v1075 = vadd.f32 0.0, %v1074
        %v1076 = vpop.f32.mrb[0].mxu0
        %v1077 = vadd.f32 0.0, %v1076
        %v1078 = vpop.f32.mrb[0].mxu0
        %v1079 = vadd.f32 0.0, %v1078
        %1080 = vdwg.mxu0
        %v1081 = vtanh.pop %v1003
        %v1082 = vtanh.pop %v1005
        %v1083 = vtanh.pop %v1007
        %v1084 = vtanh.pop %v1009
        %v1085 = vtanh.pop %v1013
        %v1086 = vtanh.pop %v1015
        %v1087 = vtanh.pop %v1017
        %v1088 = vtanh.pop %v1019
        %v1089 = vtanh.pop %v1023
        %v1090 = vtanh.pop %v1025
        %v1091 = vtanh.pop %v1027
        %v1092 = vtanh.pop %v1029
        %v1093 = vtanh.pop %v1033
        %v1094 = vtanh.pop %v1035
        %v1095 = vtanh.pop %v1037
        %v1096 = vtanh.pop %v1039
        %v1097 = vtanh.pop %v1043
        %v1098 = vtanh.pop %v1045
        %v1099 = vtanh.pop %v1047
        %v1100 = vtanh.pop %v1049
        %v1101 = vtanh.pop %v1053
        %v1102 = vtanh.pop %v1055
        %v1103 = vtanh.pop %v1057
        %v1104 = vtanh.pop %v1059
        %v1105 = vtanh.pop %v1063
        %v1106 = vtanh.pop %v1065
        %v1107 = vtanh.pop %v1067
        %v1108 = vtanh.pop %v1069
        %v1109 = vtanh.pop %v1073
        %v1110 = vtanh.pop %v1075
        %v1111 = vtanh.pop %v1077
        %v1112 = vtanh.pop %v1079
        %v1113 = vadd.f32 %v1081, %v727
        %v1114 = vadd.f32 %v1082, %v728
        %v1115 = vadd.f32 %v1083, %v729
        %v1116 = vadd.f32 %v1084, %v730
        %v1117 = vadd.f32 %v1085, %v731
        %v1118 = vadd.f32 %v1086, %v732
        %v1119 = vadd.f32 %v1087, %v733
        %v1120 = vadd.f32 %v1088, %v734
        %v1121 = vadd.f32 %v1089, %v735
        %v1122 = vadd.f32 %v1090, %v736
        %v1123 = vadd.f32 %v1091, %v737
        %v1124 = vadd.f32 %v1092, %v738
        %v1125 = vadd.f32 %v1093, %v739
        %v1126 = vadd.f32 %v1094, %v740
        %v1127 = vadd.f32 %v1095, %v741
        %v1128 = vadd.f32 %v1096, %v742
        %v1129 = vadd.f32 %v1097, %v743
        %v1130 = vadd.f32 %v1098, %v744
        %v1131 = vadd.f32 %v1099, %v745
        %v1132 = vadd.f32 %v1100, %v746
        %v1133 = vadd.f32 %v1101, %v747
        %v1134 = vadd.f32 %v1102, %v748
        %v1135 = vadd.f32 %v1103, %v749
        %v1136 = vadd.f32 %v1104, %v750
        %v1137 = vadd.f32 %v1105, %v751
        %v1138 = vadd.f32 %v1106, %v752
        %v1139 = vadd.f32 %v1107, %v753
        %v1140 = vadd.f32 %v1108, %v754
        %v1141 = vadd.f32 %v1109, %v755
        %v1142 = vadd.f32 %v1110, %v756
        %v1143 = vadd.f32 %v1111, %v757
        %v1144 = vadd.f32 %v1112, %v758
        %v1145 = vpack.c.bf16 %v1115, %v1113
        %v1146 = vpack.c.bf16 %v1116, %v1114
        %v1147 = vpack.c.bf16 %v1119, %v1117
        %v1148 = vpack.c.bf16 %v1120, %v1118
        %v1149 = vpack.c.bf16 %v1123, %v1121
        %v1150 = vpack.c.bf16 %v1124, %v1122
        %v1151 = vpack.c.bf16 %v1127, %v1125
        %v1152 = vpack.c.bf16 %v1128, %v1126
        %v1153 = vpack.c.bf16 %v1131, %v1129
        %v1154 = vpack.c.bf16 %v1132, %v1130
        %v1155 = vpack.c.bf16 %v1135, %v1133
        %v1156 = vpack.c.bf16 %v1136, %v1134
        %v1157 = vpack.c.bf16 %v1139, %v1137
        %v1158 = vpack.c.bf16 %v1140, %v1138
        %v1159 = vpack.c.bf16 %v1143, %v1141
        %v1160 = vpack.c.bf16 %v1144, %v1142
        %s1161 = scalar_lea.vmem [#allocation2], 512
        %v1162 = vld [vmem:[%s1161] sm:$0xff]
        %v1163 = vld [vmem:[%s1161 + $0x8] sm:$0xff]
        %v1164 = vld [vmem:[%s1161 + $0x10] sm:$0xff]
        %v1165 = vld [vmem:[%s1161 + $0x18] sm:$0xff]
        %v1166 = vld [vmem:[%s1161 + $0x20] sm:$0xff]
        %v1167 = vld [vmem:[%s1161 + $0x28] sm:$0xff]
        %v1168 = vld [vmem:[%s1161 + $0x30] sm:$0xff]
        %v1169 = vld [vmem:[%s1161 + $0x38] sm:$0xff]
        %v1170 = vld [vmem:[%s1161 + $0x40] sm:$0xff]
        %v1171 = vld [vmem:[%s1161 + $0x48] sm:$0xff]
        %v1172 = vld [vmem:[%s1161 + $0x50] sm:$0xff]
        %v1173 = vld [vmem:[%s1161 + $0x58] sm:$0xff]
        %v1174 = vld [vmem:[%s1161 + $0x60] sm:$0xff]
        %v1175 = vld [vmem:[%s1161 + $0x68] sm:$0xff]
        %v1176 = vld [vmem:[%s1161 + $0x70] sm:$0xff]
        %v1177 = vld [vmem:[%s1161 + $0x78] sm:$0xff]
        %v1178 = vld [vmem:[%s1161 + $0x80] sm:$0xff]
        %v1179 = vld [vmem:[%s1161 + $0x88] sm:$0xff]
        %v1180 = vld [vmem:[%s1161 + $0x90] sm:$0xff]
        %v1181 = vld [vmem:[%s1161 + $0x98] sm:$0xff]
        %v1182 = vld [vmem:[%s1161 + $0xa0] sm:$0xff]
        %v1183 = vld [vmem:[%s1161 + $0xa8] sm:$0xff]
        %v1184 = vld [vmem:[%s1161 + $0xb0] sm:$0xff]
        %v1185 = vld [vmem:[%s1161 + $0xb8] sm:$0xff]
        %v1186 = vld [vmem:[%s1161 + $0xc0] sm:$0xff]
        %v1187 = vld [vmem:[%s1161 + $0xc8] sm:$0xff]
        %v1188 = vld [vmem:[%s1161 + $0xd0] sm:$0xff]
        %v1189 = vld [vmem:[%s1161 + $0xd8] sm:$0xff]
        %v1190 = vld [vmem:[%s1161 + $0xe0] sm:$0xff]
        %v1191 = vld [vmem:[%s1161 + $0xe8] sm:$0xff]
        %v1192 = vld [vmem:[%s1161 + $0xf0] sm:$0xff]
        %v1193 = vld [vmem:[%s1161 + $0xf8] sm:$0xff]
        %v1226 = vunpack.c.l.b16 %v1162
        %v1227 = vunpack.c.h.b16 %v1162
        %v1228 = vunpack.c.l.b16 %v1163
        %v1229 = vunpack.c.h.b16 %v1163
        %v1230 = vunpack.c.l.b16 %v1164
        %v1231 = vunpack.c.h.b16 %v1164
        %v1232 = vunpack.c.l.b16 %v1165
        %v1233 = vunpack.c.h.b16 %v1165
        %v1234 = vunpack.c.l.b16 %v1166
        %v1235 = vunpack.c.h.b16 %v1166
        %v1236 = vunpack.c.l.b16 %v1167
        %v1237 = vunpack.c.h.b16 %v1167
        %v1238 = vunpack.c.l.b16 %v1168
        %v1239 = vunpack.c.h.b16 %v1168
        %v1240 = vunpack.c.l.b16 %v1169
        %v1241 = vunpack.c.h.b16 %v1169
        %v1242 = vunpack.c.l.b16 %v1170
        %v1243 = vunpack.c.h.b16 %v1170
        %v1244 = vunpack.c.l.b16 %v1171
        %v1245 = vunpack.c.h.b16 %v1171
        %v1246 = vunpack.c.l.b16 %v1172
        %v1247 = vunpack.c.h.b16 %v1172
        %v1248 = vunpack.c.l.b16 %v1173
        %v1249 = vunpack.c.h.b16 %v1173
        %v1250 = vunpack.c.l.b16 %v1174
        %v1251 = vunpack.c.h.b16 %v1174
        %v1252 = vunpack.c.l.b16 %v1175
        %v1253 = vunpack.c.h.b16 %v1175
        %v1254 = vunpack.c.l.b16 %v1176
        %v1255 = vunpack.c.h.b16 %v1176
        %v1256 = vunpack.c.l.b16 %v1177
        %v1257 = vunpack.c.h.b16 %v1177
        %v1258 = vunpack.c.l.b16 %v1178
        %v1259 = vunpack.c.h.b16 %v1178
        %v1260 = vunpack.c.l.b16 %v1179
        %v1261 = vunpack.c.h.b16 %v1179
        %v1262 = vunpack.c.l.b16 %v1180
        %v1263 = vunpack.c.h.b16 %v1180
        %v1264 = vunpack.c.l.b16 %v1181
        %v1265 = vunpack.c.h.b16 %v1181
        %v1266 = vunpack.c.l.b16 %v1182
        %v1267 = vunpack.c.h.b16 %v1182
        %v1268 = vunpack.c.l.b16 %v1183
        %v1269 = vunpack.c.h.b16 %v1183
        %v1270 = vunpack.c.l.b16 %v1184
        %v1271 = vunpack.c.h.b16 %v1184
        %v1272 = vunpack.c.l.b16 %v1185
        %v1273 = vunpack.c.h.b16 %v1185
        %v1274 = vunpack.c.l.b16 %v1186
        %v1275 = vunpack.c.h.b16 %v1186
        %v1276 = vunpack.c.l.b16 %v1187
        %v1277 = vunpack.c.h.b16 %v1187
        %v1278 = vunpack.c.l.b16 %v1188
        %v1279 = vunpack.c.h.b16 %v1188
        %v1280 = vunpack.c.l.b16 %v1189
        %v1281 = vunpack.c.h.b16 %v1189
        %v1282 = vunpack.c.l.b16 %v1190
        %v1283 = vunpack.c.h.b16 %v1190
        %v1284 = vunpack.c.l.b16 %v1191
        %v1285 = vunpack.c.h.b16 %v1191
        %v1286 = vunpack.c.l.b16 %v1192
        %v1287 = vunpack.c.h.b16 %v1192
        %v1288 = vunpack.c.l.b16 %v1193
        %v1289 = vunpack.c.h.b16 %v1193
        %v1290 = vpack.c.b16 %v1228, %v1226
        %v1291 = vpack.c.b16 %v1229, %v1227
        %v1292 = vpack.c.b16 %v1232, %v1230
        %v1293 = vpack.c.b16 %v1233, %v1231
        %v1294 = vpack.c.b16 %v1236, %v1234
        %v1295 = vpack.c.b16 %v1237, %v1235
        %v1296 = vpack.c.b16 %v1240, %v1238
        %v1297 = vpack.c.b16 %v1241, %v1239
        %v1298 = vpack.c.b16 %v1244, %v1242
        %v1299 = vpack.c.b16 %v1245, %v1243
        %v1300 = vpack.c.b16 %v1248, %v1246
        %v1301 = vpack.c.b16 %v1249, %v1247
        %v1302 = vpack.c.b16 %v1252, %v1250
        %v1303 = vpack.c.b16 %v1253, %v1251
        %v1304 = vpack.c.b16 %v1256, %v1254
        %v1305 = vpack.c.b16 %v1257, %v1255
        %v1306 = vpack.c.b16 %v1260, %v1258
        %v1307 = vpack.c.b16 %v1261, %v1259
        %v1308 = vpack.c.b16 %v1264, %v1262
        %v1309 = vpack.c.b16 %v1265, %v1263
        %v1310 = vpack.c.b16 %v1268, %v1266
        %v1311 = vpack.c.b16 %v1269, %v1267
        %v1312 = vpack.c.b16 %v1272, %v1270
        %v1313 = vpack.c.b16 %v1273, %v1271
        %v1314 = vpack.c.b16 %v1276, %v1274
        %v1315 = vpack.c.b16 %v1277, %v1275
        %v1316 = vpack.c.b16 %v1280, %v1278
        %v1317 = vpack.c.b16 %v1281, %v1279
        %v1318 = vpack.c.b16 %v1284, %v1282
        %v1319 = vpack.c.b16 %v1285, %v1283
        %v1320 = vpack.c.b16 %v1288, %v1286
        %v1321 = vpack.c.b16 %v1289, %v1287
        %1354 = vmatprep.subr.bf16.mxu0 %v1291
        %1355 = vmatpush1.bf16.msra.mxu0 %v1290
        %1356 = vmatprep.subr.bf16.mxu0 %v1293
        %1357 = vmatpush1.bf16.msra.mxu0 %v1292
        %1358 = vmatprep.subr.bf16.mxu0 %v1295
        %1359 = vmatpush1.bf16.msra.mxu0 %v1294
        %1360 = vmatprep.subr.bf16.mxu0 %v1297
        %1361 = vmatpush1.bf16.msra.mxu0 %v1296
        %1362 = vmatprep.subr.bf16.mxu0 %v1299
        %1363 = vmatpush1.bf16.msra.mxu0 %v1298
        %1364 = vmatprep.subr.bf16.mxu0 %v1301
        %1365 = vmatpush1.bf16.msra.mxu0 %v1300
        %1366 = vmatprep.subr.bf16.mxu0 %v1303
        %1367 = vmatpush1.bf16.msra.mxu0 %v1302
        %1368 = vmatprep.subr.bf16.mxu0 %v1305
        %1369 = vmatpush1.bf16.msra.mxu0 %v1304
        %1370 = vmatprep.subr.bf16.mxu0 %v1307
        %1371 = vmatpush1.bf16.msra.mxu0 %v1306
        %1372 = vmatprep.subr.bf16.mxu0 %v1309
        %1373 = vmatpush1.bf16.msra.mxu0 %v1308
        %1374 = vmatprep.subr.bf16.mxu0 %v1311
        %1375 = vmatpush1.bf16.msra.mxu0 %v1310
        %1376 = vmatprep.subr.bf16.mxu0 %v1313
        %1377 = vmatpush1.bf16.msra.mxu0 %v1312
        %1378 = vmatprep.subr.bf16.mxu0 %v1315
        %1379 = vmatpush1.bf16.msra.mxu0 %v1314
        %1380 = vmatprep.subr.bf16.mxu0 %v1317
        %1381 = vmatpush1.bf16.msra.mxu0 %v1316
        %1382 = vmatprep.subr.bf16.mxu0 %v1319
        %1383 = vmatpush1.bf16.msra.mxu0 %v1318
        %1384 = vmatprep.subr.bf16.mxu0 %v1321
        %1385 = vmatpush1.bf16.msra.mxu0 %v1320
        %1386 = vmatprep.mubr.bf16.mxu0 %v1146
        %1387 = vmatmul.mubr.bf16.gmra.mrb[0].mxu0 %v1145
        %v1388 = vpop.f32.mrb[0].mxu0
        %v1389 = vadd.f32 0.0, %v1388
        %v1390 = vpop.f32.mrb[0].mxu0
        %v1391 = vadd.f32 0.0, %v1390
        %v1392 = vpop.f32.mrb[0].mxu0
        %v1393 = vadd.f32 0.0, %v1392
        %v1394 = vpop.f32.mrb[0].mxu0
        %v1395 = vadd.f32 0.0, %v1394
        %1396 = vmatprep.mubr.bf16.mxu0 %v1148
        %1397 = vmatmul.mubr.bf16.gmra.mrb[0].mxu0 %v1147
        %v1398 = vpop.f32.mrb[0].mxu0
        %v1399 = vadd.f32 0.0, %v1398
        %v1400 = vpop.f32.mrb[0].mxu0
        %v1401 = vadd.f32 0.0, %v1400
        %v1402 = vpop.f32.mrb[0].mxu0
        %v1403 = vadd.f32 0.0, %v1402
        %v1404 = vpop.f32.mrb[0].mxu0
        %v1405 = vadd.f32 0.0, %v1404
        %1406 = vmatprep.mubr.bf16.mxu0 %v1150
        %1407 = vmatmul.mubr.bf16.gmra.mrb[0].mxu0 %v1149
        %v1408 = vpop.f32.mrb[0].mxu0
        %v1409 = vadd.f32 0.0, %v1408
        %v1410 = vpop.f32.mrb[0].mxu0
        %v1411 = vadd.f32 0.0, %v1410
        %v1412 = vpop.f32.mrb[0].mxu0
        %v1413 = vadd.f32 0.0, %v1412
        %v1414 = vpop.f32.mrb[0].mxu0
        %v1415 = vadd.f32 0.0, %v1414
        %1416 = vmatprep.mubr.bf16.mxu0 %v1152
        %1417 = vmatmul.mubr.bf16.gmra.mrb[0].mxu0 %v1151
        %v1418 = vpop.f32.mrb[0].mxu0
        %v1419 = vadd.f32 0.0, %v1418
        %v1420 = vpop.f32.mrb[0].mxu0
        %v1421 = vadd.f32 0.0, %v1420
        %v1422 = vpop.f32.mrb[0].mxu0
        %v1423 = vadd.f32 0.0, %v1422
        %v1424 = vpop.f32.mrb[0].mxu0
        %v1425 = vadd.f32 0.0, %v1424
        %1426 = vmatprep.mubr.bf16.mxu0 %v1154
        %1427 = vmatmul.mubr.bf16.gmra.mrb[0].mxu0 %v1153
        %v1428 = vpop.f32.mrb[0].mxu0
        %v1429 = vadd.f32 0.0, %v1428
        %v1430 = vpop.f32.mrb[0].mxu0
        %v1431 = vadd.f32 0.0, %v1430
        %v1432 = vpop.f32.mrb[0].mxu0
        %v1433 = vadd.f32 0.0, %v1432
        %v1434 = vpop.f32.mrb[0].mxu0
        %v1435 = vadd.f32 0.0, %v1434
        %1436 = vmatprep.mubr.bf16.mxu0 %v1156
        %1437 = vmatmul.mubr.bf16.gmra.mrb[0].mxu0 %v1155
        %v1438 = vpop.f32.mrb[0].mxu0
        %v1439 = vadd.f32 0.0, %v1438
        %v1440 = vpop.f32.mrb[0].mxu0
        %v1441 = vadd.f32 0.0, %v1440
        %v1442 = vpop.f32.mrb[0].mxu0
        %v1443 = vadd.f32 0.0, %v1442
        %v1444 = vpop.f32.mrb[0].mxu0
        %v1445 = vadd.f32 0.0, %v1444
        %1446 = vmatprep.mubr.bf16.mxu0 %v1158
        %1447 = vmatmul.mubr.bf16.gmra.mrb[0].mxu0 %v1157
        %v1448 = vpop.f32.mrb[0].mxu0
        %v1449 = vadd.f32 0.0, %v1448
        %v1450 = vpop.f32.mrb[0].mxu0
        %v1451 = vadd.f32 0.0, %v1450
        %v1452 = vpop.f32.mrb[0].mxu0
        %v1453 = vadd.f32 0.0, %v1452
        %v1454 = vpop.f32.mrb[0].mxu0
        %v1455 = vadd.f32 0.0, %v1454
        %1456 = vmatprep.mubr.bf16.mxu0 %v1160
        %1457 = vmatmul.mubr.bf16.gmra.mrb[0].mxu0 %v1159
        %v1458 = vpop.f32.mrb[0].mxu0
        %v1459 = vadd.f32 0.0, %v1458
        %v1460 = vpop.f32.mrb[0].mxu0
        %v1461 = vadd.f32 0.0, %v1460
        %v1462 = vpop.f32.mrb[0].mxu0
        %v1463 = vadd.f32 0.0, %v1462
        %v1464 = vpop.f32.mrb[0].mxu0
        %v1465 = vadd.f32 0.0, %v1464
        %1466 = vdwg.mxu0
        %v1467 = vtanh.pop %v1389
        %v1468 = vtanh.pop %v1391
        %v1469 = vtanh.pop %v1393
        %v1470 = vtanh.pop %v1395
        %v1471 = vtanh.pop %v1399
        %v1472 = vtanh.pop %v1401
        %v1473 = vtanh.pop %v1403
        %v1474 = vtanh.pop %v1405
        %v1475 = vtanh.pop %v1409
        %v1476 = vtanh.pop %v1411
        %v1477 = vtanh.pop %v1413
        %v1478 = vtanh.pop %v1415
        %v1479 = vtanh.pop %v1419
        %v1480 = vtanh.pop %v1421
        %v1481 = vtanh.pop %v1423
        %v1482 = vtanh.pop %v1425
        %v1483 = vtanh.pop %v1429
        %v1484 = vtanh.pop %v1431
        %v1485 = vtanh.pop %v1433
        %v1486 = vtanh.pop %v1435
        %v1487 = vtanh.pop %v1439
        %v1488 = vtanh.pop %v1441
        %v1489 = vtanh.pop %v1443
        %v1490 = vtanh.pop %v1445
        %v1491 = vtanh.pop %v1449
        %v1492 = vtanh.pop %v1451
        %v1493 = vtanh.pop %v1453
        %v1494 = vtanh.pop %v1455
        %v1495 = vtanh.pop %v1459
        %v1496 = vtanh.pop %v1461
        %v1497 = vtanh.pop %v1463
        %v1498 = vtanh.pop %v1465
        %v1499 = vadd.f32 %v1467, %v1113
        %v1500 = vadd.f32 %v1468, %v1114
        %v1501 = vadd.f32 %v1469, %v1115
        %v1502 = vadd.f32 %v1470, %v1116
        %v1503 = vadd.f32 %v1471, %v1117
        %v1504 = vadd.f32 %v1472, %v1118
        %v1505 = vadd.f32 %v1473, %v1119
        %v1506 = vadd.f32 %v1474, %v1120
        %v1507 = vadd.f32 %v1475, %v1121
        %v1508 = vadd.f32 %v1476, %v1122
        %v1509 = vadd.f32 %v1477, %v1123
        %v1510 = vadd.f32 %v1478, %v1124
        %v1511 = vadd.f32 %v1479, %v1125
        %v1512 = vadd.f32 %v1480, %v1126
        %v1513 = vadd.f32 %v1481, %v1127
        %v1514 = vadd.f32 %v1482, %v1128
        %v1515 = vadd.f32 %v1483, %v1129
        %v1516 = vadd.f32 %v1484, %v1130
        %v1517 = vadd.f32 %v1485, %v1131
        %v1518 = vadd.f32 %v1486, %v1132
        %v1519 = vadd.f32 %v1487, %v1133
        %v1520 = vadd.f32 %v1488, %v1134
        %v1521 = vadd.f32 %v1489, %v1135
        %v1522 = vadd.f32 %v1490, %v1136
        %v1523 = vadd.f32 %v1491, %v1137
        %v1524 = vadd.f32 %v1492, %v1138
        %v1525 = vadd.f32 %v1493, %v1139
        %v1526 = vadd.f32 %v1494, %v1140
        %v1527 = vadd.f32 %v1495, %v1141
        %v1528 = vadd.f32 %v1496, %v1142
        %v1529 = vadd.f32 %v1497, %v1143
        %v1530 = vadd.f32 %v1498, %v1144
        %v1531 = vadd.f32 %v1499, %v1500
        %1532 = vadd.xlane.f32.xlu0 %v1531
        %v1533 = vpop.xlane.xlu0 %1532
        %v1534 = vadd.f32 %v1501, %v1502
        %1535 = vadd.xlane.f32.xlu0 %v1534
        %v1536 = vpop.xlane.xlu0 %1535
        %v1537 = vadd.f32 %v1503, %v1504
        %1538 = vadd.xlane.f32.xlu0 %v1537
        %v1539 = vpop.xlane.xlu0 %1538
        %v1540 = vadd.f32 %v1505, %v1506
        %1541 = vadd.xlane.f32.xlu0 %v1540
        %v1542 = vpop.xlane.xlu0 %1541
        %v1543 = vadd.f32 %v1507, %v1508
        %1544 = vadd.xlane.f32.xlu0 %v1543
        %v1545 = vpop.xlane.xlu0 %1544
        %v1546 = vadd.f32 %v1509, %v1510
        %1547 = vadd.xlane.f32.xlu0 %v1546
        %v1548 = vpop.xlane.xlu0 %1547
        %v1549 = vadd.f32 %v1511, %v1512
        %1550 = vadd.xlane.f32.xlu0 %v1549
        %v1551 = vpop.xlane.xlu0 %1550
        %v1552 = vadd.f32 %v1513, %v1514
        %1553 = vadd.xlane.f32.xlu0 %v1552
        %v1554 = vpop.xlane.xlu0 %1553
        %v1555 = vadd.f32 %v1515, %v1516
        %1556 = vadd.xlane.f32.xlu0 %v1555
        %v1557 = vpop.xlane.xlu0 %1556
        %v1558 = vadd.f32 %v1517, %v1518
        %1559 = vadd.xlane.f32.xlu0 %v1558
        %v1560 = vpop.xlane.xlu0 %1559
        %v1561 = vadd.f32 %v1519, %v1520
        %1562 = vadd.xlane.f32.xlu0 %v1561
        %v1563 = vpop.xlane.xlu0 %1562
        %v1564 = vadd.f32 %v1521, %v1522
        %1565 = vadd.xlane.f32.xlu0 %v1564
        %v1566 = vpop.xlane.xlu0 %1565
        %v1567 = vadd.f32 %v1523, %v1524
        %1568 = vadd.xlane.f32.xlu0 %v1567
        %v1569 = vpop.xlane.xlu0 %1568
        %v1570 = vadd.f32 %v1525, %v1526
        %1571 = vadd.xlane.f32.xlu0 %v1570
        %v1572 = vpop.xlane.xlu0 %1571
        %v1573 = vadd.f32 %v1527, %v1528
        %1574 = vadd.xlane.f32.xlu0 %v1573
        %v1575 = vpop.xlane.xlu0 %1574
        %v1576 = vadd.f32 %v1529, %v1530
        %1577 = vadd.xlane.f32.xlu0 %v1576
        %v1578 = vpop.xlane.xlu0 %1577
        %v1579 = vmul.f32 %v1533, 0.00390625
        %v1580 = vmul.f32 %v1536, 0.00390625
        %v1581 = vmul.f32 %v1539, 0.00390625
        %v1582 = vmul.f32 %v1542, 0.00390625
        %v1583 = vmul.f32 %v1545, 0.00390625
        %v1584 = vmul.f32 %v1548, 0.00390625
        %v1585 = vmul.f32 %v1551, 0.00390625
        %v1586 = vmul.f32 %v1554, 0.00390625
        %v1587 = vmul.f32 %v1557, 0.00390625
        %v1588 = vmul.f32 %v1560, 0.00390625
        %v1589 = vmul.f32 %v1563, 0.00390625
        %v1590 = vmul.f32 %v1566, 0.00390625
        %v1591 = vmul.f32 %v1569, 0.00390625
        %v1592 = vmul.f32 %v1572, 0.00390625
        %v1593 = vmul.f32 %v1575, 0.00390625
        %v1594 = vmul.f32 %v1578, 0.00390625
        %v1595 = vsub.f32 %v1499, %v1579
        %v1596 = vsub.f32 %v1500, %v1579
        %v1597 = vsub.f32 %v1501, %v1580
        %v1598 = vsub.f32 %v1502, %v1580
        %v1599 = vsub.f32 %v1503, %v1581
        %v1600 = vsub.f32 %v1504, %v1581
        %v1601 = vsub.f32 %v1505, %v1582
        %v1602 = vsub.f32 %v1506, %v1582
        %v1603 = vsub.f32 %v1507, %v1583
        %v1604 = vsub.f32 %v1508, %v1583
        %v1605 = vsub.f32 %v1509, %v1584
        %v1606 = vsub.f32 %v1510, %v1584
        %v1607 = vsub.f32 %v1511, %v1585
        %v1608 = vsub.f32 %v1512, %v1585
        %v1609 = vsub.f32 %v1513, %v1586
        %v1610 = vsub.f32 %v1514, %v1586
        %v1611 = vsub.f32 %v1515, %v1587
        %v1612 = vsub.f32 %v1516, %v1587
        %v1613 = vsub.f32 %v1517, %v1588
        %v1614 = vsub.f32 %v1518, %v1588
        %v1615 = vsub.f32 %v1519, %v1589
        %v1616 = vsub.f32 %v1520, %v1589
        %v1617 = vsub.f32 %v1521, %v1590
        %v1618 = vsub.f32 %v1522, %v1590
        %v1619 = vsub.f32 %v1523, %v1591
        %v1620 = vsub.f32 %v1524, %v1591
        %v1621 = vsub.f32 %v1525, %v1592
        %v1622 = vsub.f32 %v1526, %v1592
        %v1623 = vsub.f32 %v1527, %v1593
        %v1624 = vsub.f32 %v1528, %v1593
        %v1625 = vsub.f32 %v1529, %v1594
        %v1626 = vsub.f32 %v1530, %v1594
        %1627 = vst [vmem:[%s179] sm:$0xff] %v1595
        %1628 = vst [vmem:[%s179 + $0x8] sm:$0xff] %v1596
        %1629 = vst [vmem:[%s179 + $0x10] sm:$0xff] %v1597
        %1630 = vst [vmem:[%s179 + $0x18] sm:$0xff] %v1598
        %1631 = vst [vmem:[%s179 + $0x20] sm:$0xff] %v1599
        %1632 = vst [vmem:[%s179 + $0x28] sm:$0xff] %v1600
        %1633 = vst [vmem:[%s179 + $0x30] sm:$0xff] %v1601
        %1634 = vst [vmem:[%s179 + $0x38] sm:$0xff] %v1602
        %1635 = vst [vmem:[%s179 + $0x40] sm:$0xff] %v1603
        %1636 = vst [vmem:[%s179 + $0x48] sm:$0xff] %v1604
        %1637 = vst [vmem:[%s179 + $0x50] sm:$0xff] %v1605
        %1638 = vst [vmem:[%s179 + $0x58] sm:$0xff] %v1606
        %1639 = vst [vmem:[%s179 + $0x60] sm:$0xff] %v1607
        %1640 = vst [vmem:[%s179 + $0x68] sm:$0xff] %v1608
        %1641 = vst [vmem:[%s179 + $0x70] sm:$0xff] %v1609
        %1642 = vst [vmem:[%s179 + $0x78] sm:$0xff] %v1610
        %1643 = vst [vmem:[%s179 + $0x80] sm:$0xff] %v1611
        %1644 = vst [vmem:[%s179 + $0x88] sm:$0xff] %v1612
        %1645 = vst [vmem:[%s179 + $0x90] sm:$0xff] %v1613
        %1646 = vst [vmem:[%s179 + $0x98] sm:$0xff] %v1614
        %1647 = vst [vmem:[%s179 + $0xa0] sm:$0xff] %v1615
        %1648 = vst [vmem:[%s179 + $0xa8] sm:$0xff] %v1616
        %1649 = vst [vmem:[%s179 + $0xb0] sm:$0xff] %v1617
        %1650 = vst [vmem:[%s179 + $0xb8] sm:$0xff] %v1618
        %1651 = vst [vmem:[%s179 + $0xc0] sm:$0xff] %v1619
        %1652 = vst [vmem:[%s179 + $0xc8] sm:$0xff] %v1620
        %1653 = vst [vmem:[%s179 + $0xd0] sm:$0xff] %v1621
        %1654 = vst [vmem:[%s179 + $0xd8] sm:$0xff] %v1622
        %1655 = vst [vmem:[%s179 + $0xe0] sm:$0xff] %v1623
        %1656 = vst [vmem:[%s179 + $0xe8] sm:$0xff] %v1624
        %1657 = vst [vmem:[%s179 + $0xf0] sm:$0xff] %v1625
        %1658 = vst [vmem:[%s179 + $0xf8] sm:$0xff] %v1626
        %s1659 = sand.u32 %s94, 1
        %s1660 = scalar_lea.sflag [#allocation4], %s1659
        %s1661 = sand.u32 %s94, 1
        %s1662 = smul.addr %s1661, 256
        %s1663 = scalar_lea.vmem [#allocation5], %s1662
        // Predicated region
        $region37: #{tpu_custom_call.1} parent=31 // pred_check
          %p1664 = pneg %p104
        $region38: #{tpu_custom_call.1} parent=31 // pred_check_branch
          %1666 = sbr.rel (%p1664) target = $region40
        $region39: #{tpu_custom_call.1} parent=31 // pred_region
          %s1667 = smul.u32 16, %s18
          %s1669 = ssub.s32 4096, 4096
          %1670 = vsyncadd %s1660, %s1669
          %s1671 = smul.addr %s1667, 2
          %s1672 = smul.addr %s1671, 128
          %s1673 = scalar_lea.hbm %s3, %s1672
          %s1674 = sshll.u32 %s1663, 4
          %s1675 = int_to_ptr.vmem [resolvable:$true] %s1674
          %1680 = dma.vmem_to_hbm [thread:$0]  %s1675, 4096, %s1673, %s1660, 256, 256, 16
        $region40: #{tpu_custom_call.1} parent=31 // pred_fallthru
          _
      $region32: #{tpu_custom_call.1} parent=5 // pred_fallthru
        _
      %p1681 = scmp.le.s32.totalorder 2, %s13
      // Predicated region
      $region41: #{tpu_custom_call.1} parent=5 // pred_check
        %p1682 = pneg %p1681
      $region42: #{tpu_custom_call.1} parent=5 // pred_check_branch
        %1684 = sbr.rel (%p1682) target = $region44
      $region43: #{tpu_custom_call.1} parent=5 // pred_region
        %s1685 = ssub.s32 %s13, 2
        // Predicated region
        $region45: #{tpu_custom_call.1} parent=43 // pred_check
          %p1686 = pneg %p110
        $region46: #{tpu_custom_call.1} parent=43 // pred_check_branch
          %1688 = sbr.rel (%p1686) target = $region48
        $region47: #{tpu_custom_call.1} parent=43 // pred_region
          %s1689 = sand.u32 %s95, 1
          %s1690 = scalar_lea.sflag [#allocation4], %s1689
          %s1691 = sand.u32 %s95, 1
          %s1692 = smul.addr %s1691, 256
          %s1693 = scalar_lea.vmem [#allocation5], %s1692
          %1694 = dma.done %s1690, 4096
        $region48: #{tpu_custom_call.1} parent=43 // pred_fallthru
          _
      $region44: #{tpu_custom_call.1} parent=5 // pred_fallthru
        _
    $region6: #{tpu_custom_call.1} parent=1 // loop_footer
      %s17 = sadd.s32 1, %s13
    $region7: #{tpu_custom_call.1} parent=1 // loop_footer_branch
      %12 = sbr.rel target = $region3
    $region8: #{tpu_custom_call.1} parent=1 // loop_exit
      _
    %1695 = vsyncpa [#allocation3], 1
    %s1696 = scalar_lea.sflag [#allocation3], 1
    %1697 = vsyncpa %s1696, 1
    %1698 = vsyncpa [#allocation4], 1
    %s1699 = scalar_lea.sflag [#allocation4], 1
    %1700 = vsyncpa %s1699, 1

</llo_original>
